<compile_context>
chip_gen: v7x
topology: tpu7x:2x2x1
jax: 0.10.0
libtpu: 0.0.40
codegen_flags: <defaults>
</compile_context>

<pallas_src>
import functools

import jax
import jax.numpy as jnp
from jax.experimental import pallas as pl
from jax.experimental.pallas import tpu as pltpu


_BN_EPS = 1e-5  # nn.BatchNorm2d default eps (get_norm('bn', c_out))


# ---------------------------------------------------------------------------
# Static planning helpers
# ---------------------------------------------------------------------------

def _cascade_plan(pool_sizes):
    """[(incremental_window, weight_branch_index)] such that cascading stride-1
    'same' max pools of the incremental windows reproduces each requested pool size
    (maxpool_a o maxpool_b == maxpool_{a+b-1} with -inf padding)."""
    order = sorted(range(len(pool_sizes)), key=lambda i: pool_sizes[i])
    plan = []
    prev = 1
    for i in order:
        s = pool_sizes[i]
        plan.append((s - prev + 1, i + 1))   # branch 0 is the identity branch
        prev = s
    return tuple(plan)


def _pick_images_per_step(n):
    """Amortize per-grid-step overhead for large N while keeping >=2 grid steps
    (so both v7x TensorCores get work under 'parallel' semantics)."""
    for nb in (4, 2):
        if n % nb == 0 and n // nb >= 2:
            return nb
    return 1


def _vmem_limit_bytes():
    """Generation-aware VMEM limit: ~3/4 of physical (96 MiB on v5e/v6e, 48 on v7x)."""
    try:
        cap = int(pltpu.get_tpu_info().vmem_capacity_bytes)
    except Exception:
        cap = 64 * 1024 * 1024
    return max(32 * 1024 * 1024, min(96 * 1024 * 1024, (cap * 3) // 4))


# ---------------------------------------------------------------------------
# In-kernel helpers
# ---------------------------------------------------------------------------

def _maxpool2d_same(x, size):
    """MaxPool2d(kernel_size=size, stride=1, padding=size//2) on one (H, W, C) image.

    Matches PyTorch (ceil_mode=False): implicit padding value is -inf, so border
    windows reduce over valid pixels only.  Separable row pass (major axis, cheap
    slices) + column pass (sublane axis); channels stay on the lane axis.  Exact in
    bf16 (max commutes with rounding)."""
    H, W, C = x.shape
    p = size // 2
    if p == 0:
        return x
    neg_h = jnp.full((p, W, C), -jnp.inf, dtype=x.dtype)
    xp = jnp.concatenate([neg_h, x, neg_h], axis=0)          # (H + 2p, W, C)
    r = xp[0:H, :, :]
    for d in range(1, size):
        r = jnp.maximum(r, xp[d:d + H, :, :])
    neg_w = jnp.full((H, p, C), -jnp.inf, dtype=x.dtype)
    rp = jnp.concatenate([neg_w, r, neg_w], axis=1)          # (H, W + 2p, C)
    o = rp[:, 0:W, :]
    for d in range(1, size):
        o = jnp.maximum(o, rp[:, d:d + W, :])
    return o


def _make_spp_kernel(pool_sizes, k, nb):
    """Fused SPP kernel: cascaded max-pool pyramid + per-branch/per-tap conv
    accumulation (trans-B MXU matmuls) + folded BN + Swish."""
    pad = (k - 1) // 2
    plan = _cascade_plan(pool_sizes)
    trans_b = (((1,), (1,)), ((), ()))        # contract last dims: W(Cout,C) @ tap(HW,C)^T

    def kernel(x_ref, w_ref, scale_ref, shift_ref, o_ref):
        # x_ref:     (NB, H, W, C)            NHWC input block (bf16)
        # w_ref:     (n_branch*k*k, Cout, C)  per-(branch, tap) conv weight (bf16)
        # scale_ref: (Cout, 1)                folded BatchNorm scale (f32)
        # shift_ref: (Cout, 1)                folded BatchNorm shift (f32)
        # o_ref:     (NB, Cout, H*W)          lane-dense output, already NCHW (f32)
        H, W, C = x_ref.shape[1], x_ref.shape[2], x_ref.shape[3]
        hw = H * W

        def conv_accum(z, xb, widx):
            # Accumulate branch `widx` of the conv into z (f32, (Cout, HW)).
            if pad > 0:
                zh = jnp.zeros((pad, W, C), xb.dtype)
                xb = jnp.concatenate([zh, xb, zh], axis=0)          # (H + 2p, W, C)
                zw = jnp.zeros((H + 2 * pad, pad, C), xb.dtype)
                xb = jnp.concatenate([zw, xb, zw], axis=1)          # (H + 2p, W + 2p, C)
            for dh in range(k):
                for dw in range(k):
                    tap = xb[dh:dh + H, dw:dw + W, :].reshape(hw, C)     # (HW, C) bf16
                    wt = w_ref[(widx * k + dh) * k + dw]                 # (Cout, C) bf16
                    # trans-B matmul straight to the MXU, f32 accumulation; no
                    # materialized transpose and no im2col/channel concat.
                    part = jax.lax.dot_general(
                        wt, tap, dimension_numbers=trans_b,
                        preferred_element_type=jnp.float32)              # (Cout, HW)
                    z = part if z is None else z + part
            return z

        for b in range(nb):
            x = x_ref[b]                                  # (H, W, C) bf16
            z = conv_accum(None, x, 0)                    # identity branch
            cur = x
            for inc, widx in plan:                        # cascaded SPPF pooling
                cur = _maxpool2d_same(cur, inc)
                z = conv_accum(z, cur, widx)
            z = z * scale_ref[...] + shift_ref[...]       # folded eval-mode BN (f32)
            o_ref[b] = (z * jax.nn.sigmoid(z)).astype(o_ref.dtype)   # Swish == SiLU

    return kernel


# ---------------------------------------------------------------------------
# pallas_call wrapper + public forward
# ---------------------------------------------------------------------------

def _spp_pallas(x_nhwc, w_taps, scale, shift, pool_sizes, k):
    N, H, W, C = x_nhwc.shape
    n_taps, c_out, _ = w_taps.shape
    nb = _pick_images_per_step(N)
    kernel = _make_spp_kernel(pool_sizes, k, nb)
    y = pl.pallas_call(
        kernel,
        out_shape=jax.ShapeDtypeStruct((N, c_out, H * W), jnp.float32),
        grid=(N // nb,),
        in_specs=[
            pl.BlockSpec((nb, H, W, C), lambda n: (n, 0, 0, 0)),
            pl.BlockSpec((n_taps, c_out, C), lambda n: (0, 0, 0)),
            pl.BlockSpec((c_out, 1), lambda n: (0, 0)),
            pl.BlockSpec((c_out, 1), lambda n: (0, 0)),
        ],
        out_specs=pl.BlockSpec((nb, c_out, H * W), lambda n: (n, 0, 0)),
        compiler_params=pltpu.CompilerParams(
            dimension_semantics=("parallel",),            # megacore: shard the batch axis
            vmem_limit_bytes=_vmem_limit_bytes(),
        ),
    )(x_nhwc, w_taps, scale, shift)
    # (N, Cout, H*W) is already NCHW-contiguous: this reshape is free (no transpose).
    return y.reshape(N, c_out, H, W)


@functools.partial(jax.jit, static_argnames=("pool_sizes", "k"))
def spp_forward(x_nchw, w_oihw, gamma, beta, mean, var, *, pool_sizes, k):
    """SPP.forward: Swish(BN(Conv_k(cat([x] + [maxpool_s(x) for s in pool_sizes], dim=1))))."""
    N, C, H, W = x_nchw.shape
    c_out, c_cat = w_oihw.shape[0], w_oihw.shape[1]
    n_branch = 1 + len(pool_sizes)
    assert c_cat == C * n_branch, (
        "SPP conv in_channels must equal C * (1 + len(pool_size))")
    assert k % 2 == 1 and all(s % 2 == 1 for s in pool_sizes), (
        "only odd kernel / pool sizes keep the spatial size with pad = size // 2")

    # bf16 data path: cast BEFORE the single NCHW -> NHWC transpose so it moves half
    # the bytes; the kernel already emits NCHW, so there is no output-side transpose.
    x = jnp.transpose(x_nchw.astype(jnp.bfloat16), (0, 2, 3, 1))

    # Fold eval-mode BatchNorm into a per-channel scale / shift applied in-kernel.
    scale = gamma / jnp.sqrt(var + _BN_EPS)
    shift = beta - mean * scale

    # Split the conv weight per (branch, tap):
    #   (O, n_branch*C, kh, kw) -> (n_branch, kh, kw, O, C) -> (n_branch*k*k, O, C)
    # matching the in-kernel (branch, kh, kw) accumulation order.
    w = w_oihw.reshape(c_out, n_branch, C, k, k)
    w = jnp.transpose(w, (1, 3, 4, 0, 2))
    w_taps = w.reshape(n_branch * k * k, c_out, C).astype(jnp.bfloat16)

    return _spp_pallas(x, w_taps, scale.reshape(c_out, 1), shift.reshape(c_out, 1),
                       tuple(pool_sizes), int(k))


# ---------------------------------------------------------------------------
# Pure-JAX reference (same bf16 matmul operands as the kernel) and synthetic params
# ---------------------------------------------------------------------------

def spp_reference(x_nchw, w_oihw, gamma, beta, mean, var, pool_sizes, k):
    outs = [x_nchw]
    for s in pool_sizes:
        p = s // 2
        outs.append(jax.lax.reduce_window(
            x_nchw, -jnp.inf, jax.lax.max,
            window_dimensions=(1, 1, s, s), window_strides=(1, 1, 1, 1),
            padding=((0, 0), (0, 0), (p, p), (p, p))))
    y = jnp.concatenate(outs, axis=1)
    p = (k - 1) // 2
    y = jax.lax.conv_general_dilated(
        y.astype(jnp.bfloat16), w_oihw.astype(jnp.bfloat16),
        window_strides=(1, 1), padding=((p, p), (p, p)),
        dimension_numbers=("NCHW", "OIHW", "NCHW"),
        preferred_element_type=jnp.float32)
    scale = gamma / jnp.sqrt(var + _BN_EPS)
    shift = beta - mean * scale
    z = y * scale[None, :, None, None] + shift[None, :, None, None]
    return z * jax.nn.sigmoid(z)


def build_spp_params(key, c_in_cat, c_out, k):
    """Synthetic Conv2d(bias=False) + BatchNorm2d(eval) parameters."""
    kw, kg, kb, km, kv = jax.random.split(key, 5)
    w_oihw = 0.05 * jax.random.normal(kw, (c_out, c_in_cat, k, k), jnp.float32)
    gamma = 1.0 + 0.1 * jax.random.normal(kg, (c_out,), jnp.float32)
    beta = 0.1 * jax.random.normal(kb, (c_out,), jnp.float32)
    mean = 0.1 * jax.random.normal(km, (c_out,), jnp.float32)
    var = 0.5 + jnp.abs(jax.random.normal(kv, (c_out,), jnp.float32))
    return w_oihw, gamma, beta, mean, var


if __name__ == "__main__":
    key = jax.random.PRNGKey(0)
    kx, kp = jax.random.split(key)

    # SPP(ch_in=16, ch_out=32, k=1, pool_size=(5, 9, 13), act='swish') on a 4-channel
    # input: the conv sees cat([x, pool5, pool9, pool13]) = 16 channels.
    N, C, H, W = 2, 4, 16, 16
    pool_sizes, k = (5, 9, 13), 1
    c_cat, c_out = C * (1 + len(pool_sizes)), 32

    x = jax.random.normal(kx, (N, C, H, W), jnp.float32)
    w, gamma, beta, mean, var = build_spp_params(kp, c_cat, c_out, k)

    y = spp_forward(x, w, gamma, beta, mean, var, pool_sizes=pool_sizes, k=k)
    y = jax.block_until_ready(y)
    assert y.shape == (N, c_out, H, W), y.shape
    y_ref = spp_reference(x, w, gamma, beta, mean, var, pool_sizes, k)
    err = float(jnp.max(jnp.abs(y - y_ref)))
    assert jnp.all(jnp.isfinite(y)) and err < 1e-2, err

    # Also exercise the k=3 ConvBNAct path (pad=1) with a different pool pyramid.
    pool_sizes2, k2 = (3, 5), 3
    c_cat2, c_out2 = C * (1 + len(pool_sizes2)), 8
    w2, g2, b2, m2, v2 = build_spp_params(jax.random.PRNGKey(1), c_cat2, c_out2, k2)
    y2 = spp_forward(x, w2, g2, b2, m2, v2, pool_sizes=pool_sizes2, k=k2)
    y2 = jax.block_until_ready(y2)
    y2_ref = spp_reference(x, w2, g2, b2, m2, v2, pool_sizes2, k2)
    err2 = float(jnp.max(jnp.abs(y2 - y2_ref)))
    assert y2.shape == (N, c_out2, H, W) and err2 < 1e-2, (y2.shape, err2)

    print("KERNEL_OK")
</pallas_src>

<mosaic_0001>
module attributes {stable_mosaic.version = 11 : i64} {
  func.func @kernel(%arg0: i32, %arg1: memref<1x16x16x4xbf16, #tpu.memory_space<vmem>>, %arg2: memref<4x32x4xbf16, #tpu.memory_space<vmem>>, %arg3: memref<32x1xf32, #tpu.memory_space<vmem>>, %arg4: memref<32x1xf32, #tpu.memory_space<vmem>>, %arg5: memref<1x32x256xf32, #tpu.memory_space<vmem>>) attributes {dimension_semantics = [#tpu.dimension_semantics<parallel>], iteration_bounds = array<i64: 2>, scalar_prefetch = 0 : i64, scratch_operands = 0 : i64, tpu.core_type = #tpu.core_type<tc>, window_params = [{transform_indices = @transform_0, window_bounds = array<i64: 1, 16, 16, 4>}, {pipeline_mode = #tpu.pipeline_mode<synchronous>, transform_indices = @transform_1, window_bounds = array<i64: 4, 32, 4>}, {pipeline_mode = #tpu.pipeline_mode<synchronous>, transform_indices = @transform_2, window_bounds = array<i64: 32, 1>}, {pipeline_mode = #tpu.pipeline_mode<synchronous>, transform_indices = @transform_3, window_bounds = array<i64: 32, 1>}, {transform_indices = @transform_4, window_bounds = array<i64: 1, 32, 256>}]} {
    %c0 = arith.constant 0 : index
    %c0_0 = arith.constant 0 : index
    %c0_1 = arith.constant 0 : index
    %c0_2 = arith.constant 0 : index
    %0 = vector.load %arg1[%c0, %c0_0, %c0_1, %c0_2] : memref<1x16x16x4xbf16, #tpu.memory_space<vmem>>, vector<1x16x16x4xbf16>
    %1 = vector.shape_cast %0 : vector<1x16x16x4xbf16> to vector<16x16x4xbf16>
    %2 = vector.shape_cast %1 : vector<16x16x4xbf16> to vector<256x4xbf16>
    %c0_3 = arith.constant 0 : index
    %c0_4 = arith.constant 0 : index
    %c0_5 = arith.constant 0 : index
    %3 = vector.load %arg2[%c0_3, %c0_4, %c0_5] : memref<4x32x4xbf16, #tpu.memory_space<vmem>>, vector<1x32x4xbf16>
    %4 = vector.shape_cast %3 : vector<1x32x4xbf16> to vector<32x4xbf16>
    %cst = arith.constant dense<0.000000e+00> : vector<32x256xf32>
    %5 = tpu.matmul %4, %2, %cst {dimension_numbers = #tpu.dot_dimension_numbers<[1], [1], [0], [0], [0, 0, 1, 0], [], []>} : vector<32x4xbf16>, vector<256x4xbf16>, vector<32x256xf32> -> vector<32x256xf32>
    %cst_6 = arith.constant 0xFF80 : bf16
    %6 = vector.broadcast %cst_6 : bf16 to vector<2x16x4xbf16>
    %7 = tpu.concatenate %6, %1, %6 in 0 : vector<2x16x4xbf16>, vector<16x16x4xbf16>, vector<2x16x4xbf16> -> vector<20x16x4xbf16>
    %8 = vector.extract_strided_slice %7 {offsets = [0, 0, 0], sizes = [16, 16, 4], strides = [1, 1, 1]} : vector<20x16x4xbf16> to vector<16x16x4xbf16>
    %9 = vector.extract_strided_slice %7 {offsets = [1, 0, 0], sizes = [16, 16, 4], strides = [1, 1, 1]} : vector<20x16x4xbf16> to vector<16x16x4xbf16>
    %10 = arith.maximumf %8, %9 : vector<16x16x4xbf16>
    %11 = vector.extract_strided_slice %7 {offsets = [2, 0, 0], sizes = [16, 16, 4], strides = [1, 1, 1]} : vector<20x16x4xbf16> to vector<16x16x4xbf16>
    %12 = arith.maximumf %10, %11 : vector<16x16x4xbf16>
    %13 = vector.extract_strided_slice %7 {offsets = [3, 0, 0], sizes = [16, 16, 4], strides = [1, 1, 1]} : vector<20x16x4xbf16> to vector<16x16x4xbf16>
    %14 = arith.maximumf %12, %13 : vector<16x16x4xbf16>
    %15 = vector.extract_strided_slice %7 {offsets = [4, 0, 0], sizes = [16, 16, 4], strides = [1, 1, 1]} : vector<20x16x4xbf16> to vector<16x16x4xbf16>
    %16 = arith.maximumf %14, %15 : vector<16x16x4xbf16>
    %cst_7 = arith.constant 0xFF80 : bf16
    %17 = vector.broadcast %cst_7 : bf16 to vector<16x2x4xbf16>
    %18 = tpu.concatenate %17, %16, %17 in 1 : vector<16x2x4xbf16>, vector<16x16x4xbf16>, vector<16x2x4xbf16> -> vector<16x20x4xbf16>
    %19 = vector.extract_strided_slice %18 {offsets = [0, 0, 0], sizes = [16, 16, 4], strides = [1, 1, 1]} : vector<16x20x4xbf16> to vector<16x16x4xbf16>
    %20 = vector.extract_strided_slice %18 {offsets = [0, 1, 0], sizes = [16, 16, 4], strides = [1, 1, 1]} : vector<16x20x4xbf16> to vector<16x16x4xbf16>
    %21 = arith.maximumf %19, %20 : vector<16x16x4xbf16>
    %22 = vector.extract_strided_slice %18 {offsets = [0, 2, 0], sizes = [16, 16, 4], strides = [1, 1, 1]} : vector<16x20x4xbf16> to vector<16x16x4xbf16>
    %23 = arith.maximumf %21, %22 : vector<16x16x4xbf16>
    %24 = vector.extract_strided_slice %18 {offsets = [0, 3, 0], sizes = [16, 16, 4], strides = [1, 1, 1]} : vector<16x20x4xbf16> to vector<16x16x4xbf16>
    %25 = arith.maximumf %23, %24 : vector<16x16x4xbf16>
    %26 = vector.extract_strided_slice %18 {offsets = [0, 4, 0], sizes = [16, 16, 4], strides = [1, 1, 1]} : vector<16x20x4xbf16> to vector<16x16x4xbf16>
    %27 = arith.maximumf %25, %26 : vector<16x16x4xbf16>
    %28 = vector.shape_cast %27 : vector<16x16x4xbf16> to vector<256x4xbf16>
    %c1 = arith.constant 1 : index
    %c0_8 = arith.constant 0 : index
    %c0_9 = arith.constant 0 : index
    %29 = vector.load %arg2[%c1, %c0_8, %c0_9] : memref<4x32x4xbf16, #tpu.memory_space<vmem>>, vector<1x32x4xbf16>
    %30 = vector.shape_cast %29 : vector<1x32x4xbf16> to vector<32x4xbf16>
    %cst_10 = arith.constant dense<0.000000e+00> : vector<32x256xf32>
    %31 = tpu.matmul %30, %28, %cst_10 {dimension_numbers = #tpu.dot_dimension_numbers<[1], [1], [0], [0], [0, 0, 1, 0], [], []>} : vector<32x4xbf16>, vector<256x4xbf16>, vector<32x256xf32> -> vector<32x256xf32>
    %32 = arith.addf %5, %31 : vector<32x256xf32>
    %cst_11 = arith.constant 0xFF80 : bf16
    %33 = vector.broadcast %cst_11 : bf16 to vector<2x16x4xbf16>
    %34 = tpu.concatenate %33, %27, %33 in 0 : vector<2x16x4xbf16>, vector<16x16x4xbf16>, vector<2x16x4xbf16> -> vector<20x16x4xbf16>
    %35 = vector.extract_strided_slice %34 {offsets = [0, 0, 0], sizes = [16, 16, 4], strides = [1, 1, 1]} : vector<20x16x4xbf16> to vector<16x16x4xbf16>
    %36 = vector.extract_strided_slice %34 {offsets = [1, 0, 0], sizes = [16, 16, 4], strides = [1, 1, 1]} : vector<20x16x4xbf16> to vector<16x16x4xbf16>
    %37 = arith.maximumf %35, %36 : vector<16x16x4xbf16>
    %38 = vector.extract_strided_slice %34 {offsets = [2, 0, 0], sizes = [16, 16, 4], strides = [1, 1, 1]} : vector<20x16x4xbf16> to vector<16x16x4xbf16>
    %39 = arith.maximumf %37, %38 : vector<16x16x4xbf16>
    %40 = vector.extract_strided_slice %34 {offsets = [3, 0, 0], sizes = [16, 16, 4], strides = [1, 1, 1]} : vector<20x16x4xbf16> to vector<16x16x4xbf16>
    %41 = arith.maximumf %39, %40 : vector<16x16x4xbf16>
    %42 = vector.extract_strided_slice %34 {offsets = [4, 0, 0], sizes = [16, 16, 4], strides = [1, 1, 1]} : vector<20x16x4xbf16> to vector<16x16x4xbf16>
    %43 = arith.maximumf %41, %42 : vector<16x16x4xbf16>
    %cst_12 = arith.constant 0xFF80 : bf16
    %44 = vector.broadcast %cst_12 : bf16 to vector<16x2x4xbf16>
    %45 = tpu.concatenate %44, %43, %44 in 1 : vector<16x2x4xbf16>, vector<16x16x4xbf16>, vector<16x2x4xbf16> -> vector<16x20x4xbf16>
    %46 = vector.extract_strided_slice %45 {offsets = [0, 0, 0], sizes = [16, 16, 4], strides = [1, 1, 1]} : vector<16x20x4xbf16> to vector<16x16x4xbf16>
    %47 = vector.extract_strided_slice %45 {offsets = [0, 1, 0], sizes = [16, 16, 4], strides = [1, 1, 1]} : vector<16x20x4xbf16> to vector<16x16x4xbf16>
    %48 = arith.maximumf %46, %47 : vector<16x16x4xbf16>
    %49 = vector.extract_strided_slice %45 {offsets = [0, 2, 0], sizes = [16, 16, 4], strides = [1, 1, 1]} : vector<16x20x4xbf16> to vector<16x16x4xbf16>
    %50 = arith.maximumf %48, %49 : vector<16x16x4xbf16>
    %51 = vector.extract_strided_slice %45 {offsets = [0, 3, 0], sizes = [16, 16, 4], strides = [1, 1, 1]} : vector<16x20x4xbf16> to vector<16x16x4xbf16>
    %52 = arith.maximumf %50, %51 : vector<16x16x4xbf16>
    %53 = vector.extract_strided_slice %45 {offsets = [0, 4, 0], sizes = [16, 16, 4], strides = [1, 1, 1]} : vector<16x20x4xbf16> to vector<16x16x4xbf16>
    %54 = arith.maximumf %52, %53 : vector<16x16x4xbf16>
    %55 = vector.shape_cast %54 : vector<16x16x4xbf16> to vector<256x4xbf16>
    %c2 = arith.constant 2 : index
    %c0_13 = arith.constant 0 : index
    %c0_14 = arith.constant 0 : index
    %56 = vector.load %arg2[%c2, %c0_13, %c0_14] : memref<4x32x4xbf16, #tpu.memory_space<vmem>>, vector<1x32x4xbf16>
    %57 = vector.shape_cast %56 : vector<1x32x4xbf16> to vector<32x4xbf16>
    %cst_15 = arith.constant dense<0.000000e+00> : vector<32x256xf32>
    %58 = tpu.matmul %57, %55, %cst_15 {dimension_numbers = #tpu.dot_dimension_numbers<[1], [1], [0], [0], [0, 0, 1, 0], [], []>} : vector<32x4xbf16>, vector<256x4xbf16>, vector<32x256xf32> -> vector<32x256xf32>
    %59 = arith.addf %32, %58 : vector<32x256xf32>
    %cst_16 = arith.constant 0xFF80 : bf16
    %60 = vector.broadcast %cst_16 : bf16 to vector<2x16x4xbf16>
    %61 = tpu.concatenate %60, %54, %60 in 0 : vector<2x16x4xbf16>, vector<16x16x4xbf16>, vector<2x16x4xbf16> -> vector<20x16x4xbf16>
    %62 = vector.extract_strided_slice %61 {offsets = [0, 0, 0], sizes = [16, 16, 4], strides = [1, 1, 1]} : vector<20x16x4xbf16> to vector<16x16x4xbf16>
    %63 = vector.extract_strided_slice %61 {offsets = [1, 0, 0], sizes = [16, 16, 4], strides = [1, 1, 1]} : vector<20x16x4xbf16> to vector<16x16x4xbf16>
    %64 = arith.maximumf %62, %63 : vector<16x16x4xbf16>
    %65 = vector.extract_strided_slice %61 {offsets = [2, 0, 0], sizes = [16, 16, 4], strides = [1, 1, 1]} : vector<20x16x4xbf16> to vector<16x16x4xbf16>
    %66 = arith.maximumf %64, %65 : vector<16x16x4xbf16>
    %67 = vector.extract_strided_slice %61 {offsets = [3, 0, 0], sizes = [16, 16, 4], strides = [1, 1, 1]} : vector<20x16x4xbf16> to vector<16x16x4xbf16>
    %68 = arith.maximumf %66, %67 : vector<16x16x4xbf16>
    %69 = vector.extract_strided_slice %61 {offsets = [4, 0, 0], sizes = [16, 16, 4], strides = [1, 1, 1]} : vector<20x16x4xbf16> to vector<16x16x4xbf16>
    %70 = arith.maximumf %68, %69 : vector<16x16x4xbf16>
    %cst_17 = arith.constant 0xFF80 : bf16
    %71 = vector.broadcast %cst_17 : bf16 to vector<16x2x4xbf16>
    %72 = tpu.concatenate %71, %70, %71 in 1 : vector<16x2x4xbf16>, vector<16x16x4xbf16>, vector<16x2x4xbf16> -> vector<16x20x4xbf16>
    %73 = vector.extract_strided_slice %72 {offsets = [0, 0, 0], sizes = [16, 16, 4], strides = [1, 1, 1]} : vector<16x20x4xbf16> to vector<16x16x4xbf16>
    %74 = vector.extract_strided_slice %72 {offsets = [0, 1, 0], sizes = [16, 16, 4], strides = [1, 1, 1]} : vector<16x20x4xbf16> to vector<16x16x4xbf16>
    %75 = arith.maximumf %73, %74 : vector<16x16x4xbf16>
    %76 = vector.extract_strided_slice %72 {offsets = [0, 2, 0], sizes = [16, 16, 4], strides = [1, 1, 1]} : vector<16x20x4xbf16> to vector<16x16x4xbf16>
    %77 = arith.maximumf %75, %76 : vector<16x16x4xbf16>
    %78 = vector.extract_strided_slice %72 {offsets = [0, 3, 0], sizes = [16, 16, 4], strides = [1, 1, 1]} : vector<16x20x4xbf16> to vector<16x16x4xbf16>
    %79 = arith.maximumf %77, %78 : vector<16x16x4xbf16>
    %80 = vector.extract_strided_slice %72 {offsets = [0, 4, 0], sizes = [16, 16, 4], strides = [1, 1, 1]} : vector<16x20x4xbf16> to vector<16x16x4xbf16>
    %81 = arith.maximumf %79, %80 : vector<16x16x4xbf16>
    %82 = vector.shape_cast %81 : vector<16x16x4xbf16> to vector<256x4xbf16>
    %c3 = arith.constant 3 : index
    %c0_18 = arith.constant 0 : index
    %c0_19 = arith.constant 0 : index
    %83 = vector.load %arg2[%c3, %c0_18, %c0_19] : memref<4x32x4xbf16, #tpu.memory_space<vmem>>, vector<1x32x4xbf16>
    %84 = vector.shape_cast %83 : vector<1x32x4xbf16> to vector<32x4xbf16>
    %cst_20 = arith.constant dense<0.000000e+00> : vector<32x256xf32>
    %85 = tpu.matmul %84, %82, %cst_20 {dimension_numbers = #tpu.dot_dimension_numbers<[1], [1], [0], [0], [0, 0, 1, 0], [], []>} : vector<32x4xbf16>, vector<256x4xbf16>, vector<32x256xf32> -> vector<32x256xf32>
    %86 = arith.addf %59, %85 : vector<32x256xf32>
    %c0_21 = arith.constant 0 : index
    %c0_22 = arith.constant 0 : index
    %87 = vector.load %arg3[%c0_21, %c0_22] : memref<32x1xf32, #tpu.memory_space<vmem>>, vector<32x1xf32>
    %88 = vector.broadcast %87 : vector<32x1xf32> to vector<32x256xf32>
    %89 = arith.mulf %86, %88 : vector<32x256xf32>
    %c0_23 = arith.constant 0 : index
    %c0_24 = arith.constant 0 : index
    %90 = vector.load %arg4[%c0_23, %c0_24] : memref<32x1xf32, #tpu.memory_space<vmem>>, vector<32x1xf32>
    %91 = vector.broadcast %90 : vector<32x1xf32> to vector<32x256xf32>
    %92 = arith.addf %89, %91 : vector<32x256xf32>
    %93 = arith.negf %92 : vector<32x256xf32>
    %94 = math.exp %93 : vector<32x256xf32>
    %cst_25 = arith.constant 1.000000e+00 : f32
    %95 = vector.broadcast %cst_25 : f32 to vector<32x256xf32>
    %96 = arith.addf %95, %94 : vector<32x256xf32>
    %97 = arith.divf %95, %96 : vector<32x256xf32>
    %98 = arith.mulf %92, %97 : vector<32x256xf32>
    %c0_26 = arith.constant 0 : index
    %c0_27 = arith.constant 0 : index
    %c0_28 = arith.constant 0 : index
    %99 = vector.load %arg5[%c0_26, %c0_27, %c0_28] : memref<1x32x256xf32, #tpu.memory_space<vmem>>, vector<1x32x256xf32>
    %100 = vector.shape_cast %99 : vector<1x32x256xf32> to vector<32x256xf32>
    %101 = vector.shape_cast %98 : vector<32x256xf32> to vector<1x32x256xf32>
    tpu.vector_store %arg5[%c0_26, %c0_27, %c0_28], %101 {strides = array<i32>} : memref<1x32x256xf32, #tpu.memory_space<vmem>>, vector<1x32x256xf32>,
    return
  }
  func.func @transform_0(%arg0: i32) -> (i32, i32, i32, i32) {
    %c0_i32 = arith.constant 0 : i32
    %c0_i32_0 = arith.constant 0 : i32
    %c0_i32_1 = arith.constant 0 : i32
    %c0_i32_2 = arith.constant 0 : i32
    return %arg0, %c0_i32, %c0_i32_0, %c0_i32_1 : i32, i32, i32, i32
  }
  func.func @transform_1(%arg0: i32) -> (i32, i32, i32) {
    %c0_i32 = arith.constant 0 : i32
    %c0_i32_0 = arith.constant 0 : i32
    %c0_i32_1 = arith.constant 0 : i32
    %c0_i32_2 = arith.constant 0 : i32
    return %c0_i32, %c0_i32_0, %c0_i32_1 : i32, i32, i32
  }
  func.func @transform_2(%arg0: i32) -> (i32, i32) {
    %c0_i32 = arith.constant 0 : i32
    %c0_i32_0 = arith.constant 0 : i32
    %c0_i32_1 = arith.constant 0 : i32
    return %c0_i32, %c0_i32_0 : i32, i32
  }
  func.func @transform_3(%arg0: i32) -> (i32, i32) {
    %c0_i32 = arith.constant 0 : i32
    %c0_i32_0 = arith.constant 0 : i32
    %c0_i32_1 = arith.constant 0 : i32
    return %c0_i32, %c0_i32_0 : i32, i32
  }
  func.func @transform_4(%arg0: i32) -> (i32, i32, i32) {
    %c0_i32 = arith.constant 0 : i32
    %c0_i32_0 = arith.constant 0 : i32
    %c0_i32_1 = arith.constant 0 : i32
    return %arg0, %c0_i32, %c0_i32_0 : i32, i32, i32
  }
}

</mosaic_0001>

<llo_original>
// kernel: spp_forward.1
$region0: #{spp_forward.1}
  #allocation0 [shape = 'u32[]', space=smem, size = 0x4, offset = 0x4, fixed_abs, tag = 'smem constant byte address 0x4 - core index']
  #allocation1 [shape = 'u32[144,128]{1,0:T(1,128)}', space=vmem, size = 0x12000, scoped, tag = 'internal scratch']
  %s0 = inlined_call_operand.vmem [shape: bf16[2,16,16,4], index: 0, kind: input, shape index: {}]
  %s1 = inlined_call_operand.vmem [shape: bf16[4,32,4], index: 1, kind: input, shape index: {}]
  %s2 = inlined_call_operand.vmem [shape: f32[32,1], index: 2, kind: input, shape index: {}]
  %s3 = inlined_call_operand.vmem [shape: f32[32,1], index: 3, kind: input, shape index: {}]
  %s4 = inlined_call_operand.vmem [shape: f32[2,32,256], index: 4, kind: output, shape index: {}]
  %s5 = sld [smem:[#allocation0]]
  $region49: #{spp_forward.1} parent=0
    _
  %s7 = ssub.s32 1, %s5
  %s8 = scalar_select 0, %s7, %s5
  loop: start=0, step=1, limit=4
  $region2: #{spp_forward.1} parent=0 // loop_pre_header
    _
  $region3: #{spp_forward.1} parent=0 // loop_header
    %s10 = sphi 0, %s14
    %p11 = scmp.ge.s32.totalorder %s10, 4
    %s20 = sphi 0, %s22
    %s23 = sphi 0, %s20
    %s24 = sphi 0, %s23
    %s40 = sphi 0, %s24
    %s44 = sphi 0, %s44
    %s46 = sphi 0, %s44
    %s47 = sphi 0, %s46
    %s61 = sphi 0, %s47
    %s65 = sphi 0, %s65
    %s67 = sphi 0, %s65
    %s68 = sphi 0, %s67
    %s82 = sphi 0, %s68
    %s86 = sphi 0, %s86
    %s88 = sphi 0, %s86
    %s89 = sphi 0, %s88
    %s103 = sphi 0, %s89
    %s109 = sphi 0, %s111
    %s112 = sphi 0, %s109
    %s113 = sphi 0, %s112
    %s129 = sphi 0, %s113
  $region4: #{spp_forward.1} parent=0 // loop_header_branch
    %13 = sbr.rel (%p11) target = $region8
  $region5: #{spp_forward.1} parent=0 // loop_body
    %s15 = ssub.s32 %s10, 1
    %s16 = ssub.s32 %s10, 2
    %s17 = sadd.s32 %s10, 1
    %s18 = ssub.s32 %s10, %s17
    %p19 = scmp.eq.s32.totalorder %s18, 0
    %s21 = sadd.s32 %s20, 1
    %s22 = scalar_select %p19, %s20, %s21
    %p25 = pneg %p19
    %p26 = scmp.eq.s32.totalorder %s10, 1
    %p27 = por %p25, %p26
    %p28 = scmp.ne.s32.totalorder %s20, %s23
    %p29 = scmp.eq.s32.totalorder %s10, 0
    %p30 = por %p28, %p29
    %p31 = scmp.ne.s32.totalorder %s20, %s23
    %p32 = scmp.eq.s32.totalorder %s15, 1
    %p33 = por %p31, %p32
    %p34 = scmp.ne.s32.totalorder %s23, %s24
    %p35 = scmp.eq.s32.totalorder %s15, 0
    %p36 = por %p34, %p35
    %p37 = scmp.ne.s32.totalorder %s23, %s24
    %p38 = scmp.eq.s32.totalorder %s16, 1
    %p39 = por %p37, %p38
    %p41 = scmp.ne.s32.totalorder %s24, %s40
    %p42 = scmp.eq.s32.totalorder %s16, 0
    %p43 = por %p41, %p42
    %s45 = sadd.s32 %s44, 1
    %p48 = scmp.eq.s32.totalorder %s10, 1
    %p49 = scmp.ne.s32.totalorder %s44, %s46
    %p50 = scmp.eq.s32.totalorder %s10, 0
    %p51 = por %p49, %p50
    %p52 = scmp.ne.s32.totalorder %s44, %s46
    %p53 = scmp.eq.s32.totalorder %s15, 1
    %p54 = por %p52, %p53
    %p55 = scmp.ne.s32.totalorder %s46, %s47
    %p56 = scmp.eq.s32.totalorder %s15, 0
    %p57 = por %p55, %p56
    %p58 = scmp.ne.s32.totalorder %s46, %s47
    %p59 = scmp.eq.s32.totalorder %s16, 1
    %p60 = por %p58, %p59
    %p62 = scmp.ne.s32.totalorder %s47, %s61
    %p63 = scmp.eq.s32.totalorder %s16, 0
    %p64 = por %p62, %p63
    %s66 = sadd.s32 %s65, 1
    %p69 = scmp.eq.s32.totalorder %s10, 1
    %p70 = scmp.ne.s32.totalorder %s65, %s67
    %p71 = scmp.eq.s32.totalorder %s10, 0
    %p72 = por %p70, %p71
    %p73 = scmp.ne.s32.totalorder %s65, %s67
    %p74 = scmp.eq.s32.totalorder %s15, 1
    %p75 = por %p73, %p74
    %p76 = scmp.ne.s32.totalorder %s67, %s68
    %p77 = scmp.eq.s32.totalorder %s15, 0
    %p78 = por %p76, %p77
    %p79 = scmp.ne.s32.totalorder %s67, %s68
    %p80 = scmp.eq.s32.totalorder %s16, 1
    %p81 = por %p79, %p80
    %p83 = scmp.ne.s32.totalorder %s68, %s82
    %p84 = scmp.eq.s32.totalorder %s16, 0
    %p85 = por %p83, %p84
    %s87 = sadd.s32 %s86, 1
    %p90 = scmp.eq.s32.totalorder %s10, 1
    %p91 = scmp.ne.s32.totalorder %s86, %s88
    %p92 = scmp.eq.s32.totalorder %s10, 0
    %p93 = por %p91, %p92
    %p94 = scmp.ne.s32.totalorder %s86, %s88
    %p95 = scmp.eq.s32.totalorder %s15, 1
    %p96 = por %p94, %p95
    %p97 = scmp.ne.s32.totalorder %s88, %s89
    %p98 = scmp.eq.s32.totalorder %s15, 0
    %p99 = por %p97, %p98
    %p100 = scmp.ne.s32.totalorder %s88, %s89
    %p101 = scmp.eq.s32.totalorder %s16, 1
    %p102 = por %p100, %p101
    %p104 = scmp.ne.s32.totalorder %s89, %s103
    %p105 = scmp.eq.s32.totalorder %s16, 0
    %p106 = por %p104, %p105
    %s107 = ssub.s32 %s10, %s17
    %p108 = scmp.eq.s32.totalorder %s107, 0
    %s110 = sadd.s32 %s109, 1
    %s111 = scalar_select %p108, %s109, %s110
    %p114 = pneg %p108
    %p115 = scmp.eq.s32.totalorder %s10, 1
    %p116 = por %p114, %p115
    %p117 = scmp.ne.s32.totalorder %s109, %s112
    %p118 = scmp.eq.s32.totalorder %s10, 0
    %p119 = por %p117, %p118
    %p120 = scmp.ne.s32.totalorder %s109, %s112
    %p121 = scmp.eq.s32.totalorder %s15, 1
    %p122 = por %p120, %p121
    %p123 = scmp.ne.s32.totalorder %s112, %s113
    %p124 = scmp.eq.s32.totalorder %s15, 0
    %p125 = por %p123, %p124
    %p126 = scmp.ne.s32.totalorder %s112, %s113
    %p127 = scmp.eq.s32.totalorder %s16, 1
    %p128 = por %p126, %p127
    %p130 = scmp.ne.s32.totalorder %s113, %s129
    %p131 = scmp.eq.s32.totalorder %s16, 0
    %p132 = por %p130, %p131
    %p133 = scmp.le.s32.totalorder 1, %s10
    %p134 = scmp.lt.s32.totalorder %s10, 3
    %p135 = pnand %p133, %p134
    %p136 = pneg %p135
    // Predicated region
    $region9: #{spp_forward.1} parent=5 // pred_check
      _
    $region10: #{spp_forward.1} parent=5 // pred_check_branch
      %138 = sbr.rel (%p135) target = $region12
    $region11: #{spp_forward.1} parent=5 // pred_region
      %s139 = ssub.s32 %s10, 1
      // Predicated region
      $region13: #{spp_forward.1} parent=11 // pred_check
        %p140 = pneg %p57
      $region14: #{spp_forward.1} parent=11 // pred_check_branch
        %142 = sbr.rel (%p140) target = $region16
      $region15: #{spp_forward.1} parent=11 // pred_region
        _
      $region16: #{spp_forward.1} parent=11 // pred_fallthru
        _
      // Predicated region
      $region17: #{spp_forward.1} parent=11 // pred_check
        %p143 = pneg %p78
      $region18: #{spp_forward.1} parent=11 // pred_check_branch
        %145 = sbr.rel (%p143) target = $region20
      $region19: #{spp_forward.1} parent=11 // pred_region
        _
      $region20: #{spp_forward.1} parent=11 // pred_fallthru
        _
      // Predicated region
      $region21: #{spp_forward.1} parent=11 // pred_check
        %p146 = pneg %p99
      $region22: #{spp_forward.1} parent=11 // pred_check_branch
        %148 = sbr.rel (%p146) target = $region24
      $region23: #{spp_forward.1} parent=11 // pred_region
        _
      $region24: #{spp_forward.1} parent=11 // pred_fallthru
        _
    $region12: #{spp_forward.1} parent=5 // pred_fallthru
      _
    %p149 = scmp.lt.s32.totalorder %s10, 2
    // Predicated region
    $region25: #{spp_forward.1} parent=5 // pred_check
      %p150 = pneg %p149
    $region26: #{spp_forward.1} parent=5 // pred_check_branch
      %152 = sbr.rel (%p150) target = $region28
    $region27: #{spp_forward.1} parent=5 // pred_region
      // Predicated region
      $region29: #{spp_forward.1} parent=27 // pred_check
        %p153 = pneg %p30
      $region30: #{spp_forward.1} parent=27 // pred_check_branch
        %155 = sbr.rel (%p153) target = $region32
      $region31: #{spp_forward.1} parent=27 // pred_region
        %p156 = scmp.lt.s32.totalorder %s10, 1
        %s157 = scalar_select %p156, %s10, 1
        %s158 = smul.addr %s157, 32
        %s159 = smul.addr %s158, 4
        %s160 = scalar_lea.vmem %s0, %s159
      $region32: #{spp_forward.1} parent=27 // pred_fallthru
        _
    $region28: #{spp_forward.1} parent=5 // pred_fallthru
      _
    %p161 = scmp.le.s32.totalorder 1, %s10
    %p162 = scmp.lt.s32.totalorder %s10, 3
    %p163 = pnand %p161, %p162
    %p164 = pneg %p163
    // Predicated region
    $region33: #{spp_forward.1} parent=5 // pred_check
      _
    $region34: #{spp_forward.1} parent=5 // pred_check_branch
      %166 = sbr.rel (%p163) target = $region36
    $region35: #{spp_forward.1} parent=5 // pred_region
      %s167 = ssub.s32 %s10, 1
      %p168 = scmp.lt.s32.totalorder %s15, 1
      %s169 = scalar_select %p168, %s15, 1
      %s170 = smul.addr %s169, 32
      %s171 = smul.addr %s170, 4
      %s172 = scalar_lea.vmem %s0, %s171
      %p173 = pneg %p36
      %p174 = pneg %p33
      %p175 = pneg %p57
      %p176 = pneg %p54
      %p177 = pneg %p78
      %p178 = pneg %p75
      %p179 = pneg %p99
      %p180 = pneg %p96
      %p181 = pneg %p125
      %p182 = pneg %p122
      %p183 = scmp.lt.s32.totalorder %s15, 1
      %s184 = scalar_select %p183, %s15, 1
      %s185 = smul.addr %s184, 8
      %s186 = smul.addr %s185, 8
      %s187 = scalar_lea.vmem %s4, %s186
      %p188 = scmp.lt.s32.totalorder %s15, 1
      %s189 = scalar_select %p188, %s15, 1
      %s190 = smul.addr %s189, 32
      %s191 = smul.addr %s190, 4
      %s192 = scalar_lea.vmem %s0, %s191
      %p193 = scmp.lt.s32.totalorder %s15, 1
      %s194 = scalar_select %p193, %s15, 1
      %s195 = smul.addr %s194, 8
      %s196 = smul.addr %s195, 8
      %s197 = scalar_lea.vmem %s4, %s196
      %v200 = vld [vmem:[%s192] sm:$0xf]
      %v201 = vld [vmem:[%s192 + $0x4] sm:$0xf]
      %v202 = vld [vmem:[%s192 + $0x8] sm:$0xf]
      %v203 = vld [vmem:[%s192 + $0xc] sm:$0xf]
      %v204 = vld [vmem:[%s192 + $0x10] sm:$0xf]
      %v205 = vld [vmem:[%s192 + $0x14] sm:$0xf]
      %v206 = vld [vmem:[%s192 + $0x18] sm:$0xf]
      %v207 = vld [vmem:[%s192 + $0x1c] sm:$0xf]
      %v208 = vld [vmem:[%s192 + $0x20] sm:$0xf]
      %v209 = vld [vmem:[%s192 + $0x24] sm:$0xf]
      %v210 = vld [vmem:[%s192 + $0x28] sm:$0xf]
      %v211 = vld [vmem:[%s192 + $0x2c] sm:$0xf]
      %v212 = vld [vmem:[%s192 + $0x30] sm:$0xf]
      %v213 = vld [vmem:[%s192 + $0x34] sm:$0xf]
      %v214 = vld [vmem:[%s192 + $0x38] sm:$0xf]
      %v215 = vld [vmem:[%s192 + $0x3c] sm:$0xf]
      %v216 = vld [vmem:[%s192 + $0x40] sm:$0xf]
      %v217 = vld [vmem:[%s192 + $0x44] sm:$0xf]
      %v218 = vld [vmem:[%s192 + $0x48] sm:$0xf]
      %v219 = vld [vmem:[%s192 + $0x4c] sm:$0xf]
      %v220 = vld [vmem:[%s192 + $0x50] sm:$0xf]
      %v221 = vld [vmem:[%s192 + $0x54] sm:$0xf]
      %v222 = vld [vmem:[%s192 + $0x58] sm:$0xf]
      %v223 = vld [vmem:[%s192 + $0x5c] sm:$0xf]
      %v224 = vld [vmem:[%s192 + $0x60] sm:$0xf]
      %v225 = vld [vmem:[%s192 + $0x64] sm:$0xf]
      %v226 = vld [vmem:[%s192 + $0x68] sm:$0xf]
      %v227 = vld [vmem:[%s192 + $0x6c] sm:$0xf]
      %v228 = vld [vmem:[%s192 + $0x70] sm:$0xf]
      %v229 = vld [vmem:[%s192 + $0x74] sm:$0xf]
      %v230 = vld [vmem:[%s192 + $0x78] sm:$0xf]
      %v231 = vld [vmem:[%s192 + $0x7c] sm:$0xf]
      %v232 = vld [vmem:[%s1] sm:$0xf]
      %v233 = vld [vmem:[%s1 + $0x4] sm:$0xf]
      %v234 = vld [vmem:[%s1 + $0x8] sm:$0xf]
      %v235 = vld [vmem:[%s1 + $0xc] sm:$0xf]
      %v268 = vunpack.c.l.b16 %v200
      %v269 = vunpack.c.l.b16 %v201
      %v270 = vunpack.c.l.b16 %v202
      %v271 = vunpack.c.l.b16 %v203
      %v272 = vunpack.c.l.b16 %v204
      %v273 = vunpack.c.l.b16 %v205
      %v274 = vunpack.c.l.b16 %v206
      %v275 = vunpack.c.l.b16 %v207
      %v276 = vunpack.c.l.b16 %v208
      %v277 = vunpack.c.l.b16 %v209
      %v278 = vunpack.c.l.b16 %v210
      %v279 = vunpack.c.l.b16 %v211
      %v280 = vunpack.c.l.b16 %v212
      %v281 = vunpack.c.l.b16 %v213
      %v282 = vunpack.c.l.b16 %v214
      %v283 = vunpack.c.l.b16 %v215
      %v284 = vunpack.c.l.b16 %v216
      %v285 = vunpack.c.l.b16 %v217
      %v286 = vunpack.c.l.b16 %v218
      %v287 = vunpack.c.l.b16 %v219
      %v288 = vunpack.c.l.b16 %v220
      %v289 = vunpack.c.l.b16 %v221
      %v290 = vunpack.c.l.b16 %v222
      %v291 = vunpack.c.l.b16 %v223
      %v292 = vunpack.c.l.b16 %v224
      %v293 = vunpack.c.l.b16 %v225
      %v294 = vunpack.c.l.b16 %v226
      %v295 = vunpack.c.l.b16 %v227
      %v296 = vunpack.c.l.b16 %v228
      %v297 = vunpack.c.l.b16 %v229
      %v298 = vunpack.c.l.b16 %v230
      %v299 = vunpack.c.l.b16 %v231
      %v300 = vpack.c.b16 %v269, %v268
      %v301 = vpack.c.b16 %v271, %v270
      %v302 = vpack.c.b16 %v273, %v272
      %v303 = vpack.c.b16 %v275, %v274
      %v304 = vpack.c.b16 %v277, %v276
      %v305 = vpack.c.b16 %v279, %v278
      %v306 = vpack.c.b16 %v281, %v280
      %v307 = vpack.c.b16 %v283, %v282
      %v308 = vpack.c.b16 %v285, %v284
      %v309 = vpack.c.b16 %v287, %v286
      %v310 = vpack.c.b16 %v289, %v288
      %v311 = vpack.c.b16 %v291, %v290
      %v312 = vpack.c.b16 %v293, %v292
      %v313 = vpack.c.b16 %v295, %v294
      %v314 = vpack.c.b16 %v297, %v296
      %v315 = vpack.c.b16 %v299, %v298
      %v332 = vmax.bf16 %v300, %v301
      %v333 = vmax.bf16 %v301, %v302
      %v334 = vmax.bf16 %v302, %v303
      %v335 = vmax.bf16 %v303, %v304
      %v336 = vmax.bf16 %v304, %v305
      %v337 = vmax.bf16 %v305, %v306
      %v338 = vmax.bf16 %v306, %v307
      %v339 = vmax.bf16 %v307, %v308
      %v340 = vmax.bf16 %v308, %v309
      %v341 = vmax.bf16 %v309, %v310
      %v342 = vmax.bf16 %v310, %v311
      %v343 = vmax.bf16 %v311, %v312
      %v344 = vmax.bf16 %v312, %v313
      %v345 = vmax.bf16 %v313, %v314
      %v346 = vmax.bf16 %v332, %v302
      %v347 = vmax.bf16 %v333, %v303
      %v348 = vmax.bf16 %v334, %v304
      %v349 = vmax.bf16 %v335, %v305
      %v350 = vmax.bf16 %v336, %v306
      %v351 = vmax.bf16 %v337, %v307
      %v352 = vmax.bf16 %v338, %v308
      %v353 = vmax.bf16 %v339, %v309
      %v354 = vmax.bf16 %v340, %v310
      %v355 = vmax.bf16 %v341, %v311
      %v356 = vmax.bf16 %v342, %v312
      %v357 = vmax.bf16 %v343, %v313
      %v358 = vmax.bf16 %v344, %v314
      %v359 = vmax.bf16 %v345, %v315
      %v360 = vmax.bf16 %v346, %v303
      %v361 = vmax.bf16 %v347, %v304
      %v362 = vmax.bf16 %v348, %v305
      %v363 = vmax.bf16 %v349, %v306
      %v364 = vmax.bf16 %v350, %v307
      %v365 = vmax.bf16 %v351, %v308
      %v366 = vmax.bf16 %v352, %v309
      %v367 = vmax.bf16 %v353, %v310
      %v368 = vmax.bf16 %v354, %v311
      %v369 = vmax.bf16 %v355, %v312
      %v370 = vmax.bf16 %v356, %v313
      %v371 = vmax.bf16 %v357, %v314
      %v372 = vmax.bf16 %v358, %v315
      %v373 = vmax.bf16 %v360, %v304
      %v374 = vmax.bf16 %v361, %v305
      %v375 = vmax.bf16 %v362, %v306
      %v376 = vmax.bf16 %v363, %v307
      %v377 = vmax.bf16 %v364, %v308
      %v378 = vmax.bf16 %v365, %v309
      %v379 = vmax.bf16 %v366, %v310
      %v380 = vmax.bf16 %v367, %v311
      %v381 = vmax.bf16 %v368, %v312
      %v382 = vmax.bf16 %v369, %v313
      %v383 = vmax.bf16 %v370, %v314
      %v384 = vmax.bf16 %v371, %v315
      %v401 = vrot.slane %v346, 7
      %v402 = vrot.slane %v360, 7
      %v403 = vrot.slane %v373, 7
      %v404 = vrot.slane %v374, 7
      %v405 = vrot.slane %v375, 7
      %v406 = vrot.slane %v376, 7
      %v407 = vrot.slane %v377, 7
      %v408 = vrot.slane %v378, 7
      %v409 = vrot.slane %v379, 7
      %v410 = vrot.slane %v380, 7
      %v411 = vrot.slane %v381, 7
      %v412 = vrot.slane %v382, 7
      %v413 = vrot.slane %v383, 7
      %v414 = vrot.slane %v384, 7
      %v415 = vrot.slane %v372, 7
      %v416 = vrot.slane %v359, 7
      %vm417 = vcmask 1040384
      %v420 = vsel %vm417, 4286644096, %v401
      %v423 = vsel %vm417, 4286644096, %v402
      %v426 = vsel %vm417, 4286644096, %v403
      %v429 = vsel %vm417, 4286644096, %v404
      %v432 = vsel %vm417, 4286644096, %v405
      %v435 = vsel %vm417, 4286644096, %v406
      %v438 = vsel %vm417, 4286644096, %v407
      %v441 = vsel %vm417, 4286644096, %v408
      %v444 = vsel %vm417, 4286644096, %v409
      %v447 = vsel %vm417, 4286644096, %v410
      %v450 = vsel %vm417, 4286644096, %v411
      %v453 = vsel %vm417, 4286644096, %v412
      %v456 = vsel %vm417, 4286644096, %v413
      %v459 = vsel %vm417, 4286644096, %v414
      %v462 = vsel %vm417, 4286644096, %v415
      %v465 = vsel %vm417, 4286644096, %v416
      %v467 = vsel %vm417, %v401, 4286644096
      %v468 = vsel %vm417, %v402, 4286644096
      %v469 = vsel %vm417, %v403, 4286644096
      %v470 = vsel %vm417, %v404, 4286644096
      %v471 = vsel %vm417, %v405, 4286644096
      %v472 = vsel %vm417, %v406, 4286644096
      %v473 = vsel %vm417, %v407, 4286644096
      %v474 = vsel %vm417, %v408, 4286644096
      %v475 = vsel %vm417, %v409, 4286644096
      %v476 = vsel %vm417, %v410, 4286644096
      %v477 = vsel %vm417, %v411, 4286644096
      %v478 = vsel %vm417, %v412, 4286644096
      %v479 = vsel %vm417, %v413, 4286644096
      %v480 = vsel %vm417, %v414, 4286644096
      %v481 = vsel %vm417, %v415, 4286644096
      %v482 = vsel %vm417, %v416, 4286644096
      %vm483 = vsmask.f32 7424
      %v484 = vshrl.u32 %v420, 16
      %v486 = vshll.u32 %v420, 16
      %v488 = vrot.slane %v486, 1
      %v489 = vor.u32 %v484, %v488
      %v490 = vshll.u32 %v467, 16
      %v492 = vrot.slane %v490, 1
      %v493 = vsel %vm483, %v489, %v492
      %v494 = vshrl.u32 %v423, 16
      %v496 = vshll.u32 %v423, 16
      %v498 = vrot.slane %v496, 1
      %v499 = vor.u32 %v494, %v498
      %v500 = vshll.u32 %v468, 16
      %v502 = vrot.slane %v500, 1
      %v503 = vsel %vm483, %v499, %v502
      %v504 = vshrl.u32 %v426, 16
      %v506 = vshll.u32 %v426, 16
      %v508 = vrot.slane %v506, 1
      %v509 = vor.u32 %v504, %v508
      %v510 = vshll.u32 %v469, 16
      %v512 = vrot.slane %v510, 1
      %v513 = vsel %vm483, %v509, %v512
      %v514 = vshrl.u32 %v429, 16
      %v516 = vshll.u32 %v429, 16
      %v518 = vrot.slane %v516, 1
      %v519 = vor.u32 %v514, %v518
      %v520 = vshll.u32 %v470, 16
      %v522 = vrot.slane %v520, 1
      %v523 = vsel %vm483, %v519, %v522
      %v524 = vshrl.u32 %v432, 16
      %v526 = vshll.u32 %v432, 16
      %v528 = vrot.slane %v526, 1
      %v529 = vor.u32 %v524, %v528
      %v530 = vshll.u32 %v471, 16
      %v532 = vrot.slane %v530, 1
      %v533 = vsel %vm483, %v529, %v532
      %v534 = vshrl.u32 %v435, 16
      %v536 = vshll.u32 %v435, 16
      %v538 = vrot.slane %v536, 1
      %v539 = vor.u32 %v534, %v538
      %v540 = vshll.u32 %v472, 16
      %v542 = vrot.slane %v540, 1
      %v543 = vsel %vm483, %v539, %v542
      %v544 = vshrl.u32 %v438, 16
      %v546 = vshll.u32 %v438, 16
      %v548 = vrot.slane %v546, 1
      %v549 = vor.u32 %v544, %v548
      %v550 = vshll.u32 %v473, 16
      %v552 = vrot.slane %v550, 1
      %v553 = vsel %vm483, %v549, %v552
      %v554 = vshrl.u32 %v441, 16
      %v556 = vshll.u32 %v441, 16
      %v558 = vrot.slane %v556, 1
      %v559 = vor.u32 %v554, %v558
      %v560 = vshll.u32 %v474, 16
      %v562 = vrot.slane %v560, 1
      %v563 = vsel %vm483, %v559, %v562
      %v564 = vshrl.u32 %v444, 16
      %v566 = vshll.u32 %v444, 16
      %v568 = vrot.slane %v566, 1
      %v569 = vor.u32 %v564, %v568
      %v570 = vshll.u32 %v475, 16
      %v572 = vrot.slane %v570, 1
      %v573 = vsel %vm483, %v569, %v572
      %v574 = vshrl.u32 %v447, 16
      %v576 = vshll.u32 %v447, 16
      %v578 = vrot.slane %v576, 1
      %v579 = vor.u32 %v574, %v578
      %v580 = vshll.u32 %v476, 16
      %v582 = vrot.slane %v580, 1
      %v583 = vsel %vm483, %v579, %v582
      %v584 = vshrl.u32 %v450, 16
      %v586 = vshll.u32 %v450, 16
      %v588 = vrot.slane %v586, 1
      %v589 = vor.u32 %v584, %v588
      %v590 = vshll.u32 %v477, 16
      %v592 = vrot.slane %v590, 1
      %v593 = vsel %vm483, %v589, %v592
      %v594 = vshrl.u32 %v453, 16
      %v596 = vshll.u32 %v453, 16
      %v598 = vrot.slane %v596, 1
      %v599 = vor.u32 %v594, %v598
      %v600 = vshll.u32 %v478, 16
      %v602 = vrot.slane %v600, 1
      %v603 = vsel %vm483, %v599, %v602
      %v604 = vshrl.u32 %v456, 16
      %v606 = vshll.u32 %v456, 16
      %v608 = vrot.slane %v606, 1
      %v609 = vor.u32 %v604, %v608
      %v610 = vshll.u32 %v479, 16
      %v612 = vrot.slane %v610, 1
      %v613 = vsel %vm483, %v609, %v612
      %v614 = vshrl.u32 %v459, 16
      %v616 = vshll.u32 %v459, 16
      %v618 = vrot.slane %v616, 1
      %v619 = vor.u32 %v614, %v618
      %v620 = vshll.u32 %v480, 16
      %v622 = vrot.slane %v620, 1
      %v623 = vsel %vm483, %v619, %v622
      %v624 = vshrl.u32 %v462, 16
      %v626 = vshll.u32 %v462, 16
      %v628 = vrot.slane %v626, 1
      %v629 = vor.u32 %v624, %v628
      %v630 = vshll.u32 %v481, 16
      %v632 = vrot.slane %v630, 1
      %v633 = vsel %vm483, %v629, %v632
      %v634 = vshrl.u32 %v465, 16
      %v636 = vshll.u32 %v465, 16
      %v638 = vrot.slane %v636, 1
      %v639 = vor.u32 %v634, %v638
      %v640 = vshll.u32 %v482, 16
      %v642 = vrot.slane %v640, 1
      %v643 = vsel %vm483, %v639, %v642
      %v660 = vmax.bf16 %v420, %v493
      %v661 = vmax.bf16 %v423, %v503
      %v662 = vmax.bf16 %v426, %v513
      %v663 = vmax.bf16 %v429, %v523
      %v664 = vmax.bf16 %v432, %v533
      %v665 = vmax.bf16 %v435, %v543
      %v666 = vmax.bf16 %v438, %v553
      %v667 = vmax.bf16 %v441, %v563
      %v668 = vmax.bf16 %v444, %v573
      %v669 = vmax.bf16 %v447, %v583
      %v670 = vmax.bf16 %v450, %v593
      %v671 = vmax.bf16 %v453, %v603
      %v672 = vmax.bf16 %v456, %v613
      %v673 = vmax.bf16 %v459, %v623
      %v674 = vmax.bf16 %v462, %v633
      %v675 = vmax.bf16 %v465, %v643
      %vm708 = vcmask 1046528
      %v709 = vrot.slane %v420, 1
      %v710 = vrot.slane %v467, 1
      %v711 = vsel %vm708, %v709, %v710
      %v712 = vrot.slane %v423, 1
      %v713 = vrot.slane %v468, 1
      %v714 = vsel %vm708, %v712, %v713
      %v715 = vrot.slane %v426, 1
      %v716 = vrot.slane %v469, 1
      %v717 = vsel %vm708, %v715, %v716
      %v718 = vrot.slane %v429, 1
      %v719 = vrot.slane %v470, 1
      %v720 = vsel %vm708, %v718, %v719
      %v721 = vrot.slane %v432, 1
      %v722 = vrot.slane %v471, 1
      %v723 = vsel %vm708, %v721, %v722
      %v724 = vrot.slane %v435, 1
      %v725 = vrot.slane %v472, 1
      %v726 = vsel %vm708, %v724, %v725
      %v727 = vrot.slane %v438, 1
      %v728 = vrot.slane %v473, 1
      %v729 = vsel %vm708, %v727, %v728
      %v730 = vrot.slane %v441, 1
      %v731 = vrot.slane %v474, 1
      %v732 = vsel %vm708, %v730, %v731
      %v733 = vrot.slane %v444, 1
      %v734 = vrot.slane %v475, 1
      %v735 = vsel %vm708, %v733, %v734
      %v736 = vrot.slane %v447, 1
      %v737 = vrot.slane %v476, 1
      %v738 = vsel %vm708, %v736, %v737
      %v739 = vrot.slane %v450, 1
      %v740 = vrot.slane %v477, 1
      %v741 = vsel %vm708, %v739, %v740
      %v742 = vrot.slane %v453, 1
      %v743 = vrot.slane %v478, 1
      %v744 = vsel %vm708, %v742, %v743
      %v745 = vrot.slane %v456, 1
      %v746 = vrot.slane %v479, 1
      %v747 = vsel %vm708, %v745, %v746
      %v748 = vrot.slane %v459, 1
      %v749 = vrot.slane %v480, 1
      %v750 = vsel %vm708, %v748, %v749
      %v751 = vrot.slane %v462, 1
      %v752 = vrot.slane %v481, 1
      %v753 = vsel %vm708, %v751, %v752
      %v754 = vrot.slane %v465, 1
      %v755 = vrot.slane %v482, 1
      %v756 = vsel %vm708, %v754, %v755
      %v773 = vmax.bf16 %v660, %v711
      %v774 = vmax.bf16 %v661, %v714
      %v775 = vmax.bf16 %v662, %v717
      %v776 = vmax.bf16 %v663, %v720
      %v777 = vmax.bf16 %v664, %v723
      %v778 = vmax.bf16 %v665, %v726
      %v779 = vmax.bf16 %v666, %v729
      %v780 = vmax.bf16 %v667, %v732
      %v781 = vmax.bf16 %v668, %v735
      %v782 = vmax.bf16 %v669, %v738
      %v783 = vmax.bf16 %v670, %v741
      %v784 = vmax.bf16 %v671, %v744
      %v785 = vmax.bf16 %v672, %v747
      %v786 = vmax.bf16 %v673, %v750
      %v787 = vmax.bf16 %v674, %v753
      %v788 = vmax.bf16 %v675, %v756
      %vm789 = vsmask.f32 6400
      %v790 = vrot.slane %v484, 1
      %v791 = vrot.slane %v486, 2
      %v792 = vor.u32 %v790, %v791
      %v793 = vshrl.u32 %v467, 16
      %v795 = vrot.slane %v793, 1
      %v796 = vrot.slane %v490, 2
      %v797 = vor.u32 %v795, %v796
      %v798 = vsel %vm789, %v792, %v797
      %v799 = vrot.slane %v494, 1
      %v800 = vrot.slane %v496, 2
      %v801 = vor.u32 %v799, %v800
      %v802 = vshrl.u32 %v468, 16
      %v804 = vrot.slane %v802, 1
      %v805 = vrot.slane %v500, 2
      %v806 = vor.u32 %v804, %v805
      %v807 = vsel %vm789, %v801, %v806
      %v808 = vrot.slane %v504, 1
      %v809 = vrot.slane %v506, 2
      %v810 = vor.u32 %v808, %v809
      %v811 = vshrl.u32 %v469, 16
      %v813 = vrot.slane %v811, 1
      %v814 = vrot.slane %v510, 2
      %v815 = vor.u32 %v813, %v814
      %v816 = vsel %vm789, %v810, %v815
      %v817 = vrot.slane %v514, 1
      %v818 = vrot.slane %v516, 2
      %v819 = vor.u32 %v817, %v818
      %v820 = vshrl.u32 %v470, 16
      %v822 = vrot.slane %v820, 1
      %v823 = vrot.slane %v520, 2
      %v824 = vor.u32 %v822, %v823
      %v825 = vsel %vm789, %v819, %v824
      %v826 = vrot.slane %v524, 1
      %v827 = vrot.slane %v526, 2
      %v828 = vor.u32 %v826, %v827
      %v829 = vshrl.u32 %v471, 16
      %v831 = vrot.slane %v829, 1
      %v832 = vrot.slane %v530, 2
      %v833 = vor.u32 %v831, %v832
      %v834 = vsel %vm789, %v828, %v833
      %v835 = vrot.slane %v534, 1
      %v836 = vrot.slane %v536, 2
      %v837 = vor.u32 %v835, %v836
      %v838 = vshrl.u32 %v472, 16
      %v840 = vrot.slane %v838, 1
      %v841 = vrot.slane %v540, 2
      %v842 = vor.u32 %v840, %v841
      %v843 = vsel %vm789, %v837, %v842
      %v844 = vrot.slane %v544, 1
      %v845 = vrot.slane %v546, 2
      %v846 = vor.u32 %v844, %v845
      %v847 = vshrl.u32 %v473, 16
      %v849 = vrot.slane %v847, 1
      %v850 = vrot.slane %v550, 2
      %v851 = vor.u32 %v849, %v850
      %v852 = vsel %vm789, %v846, %v851
      %v853 = vrot.slane %v554, 1
      %v854 = vrot.slane %v556, 2
      %v855 = vor.u32 %v853, %v854
      %v856 = vshrl.u32 %v474, 16
      %v858 = vrot.slane %v856, 1
      %v859 = vrot.slane %v560, 2
      %v860 = vor.u32 %v858, %v859
      %v861 = vsel %vm789, %v855, %v860
      %v862 = vrot.slane %v564, 1
      %v863 = vrot.slane %v566, 2
      %v864 = vor.u32 %v862, %v863
      %v865 = vshrl.u32 %v475, 16
      %v867 = vrot.slane %v865, 1
      %v868 = vrot.slane %v570, 2
      %v869 = vor.u32 %v867, %v868
      %v870 = vsel %vm789, %v864, %v869
      %v871 = vrot.slane %v574, 1
      %v872 = vrot.slane %v576, 2
      %v873 = vor.u32 %v871, %v872
      %v874 = vshrl.u32 %v476, 16
      %v876 = vrot.slane %v874, 1
      %v877 = vrot.slane %v580, 2
      %v878 = vor.u32 %v876, %v877
      %v879 = vsel %vm789, %v873, %v878
      %v880 = vrot.slane %v584, 1
      %v881 = vrot.slane %v586, 2
      %v882 = vor.u32 %v880, %v881
      %v883 = vshrl.u32 %v477, 16
      %v885 = vrot.slane %v883, 1
      %v886 = vrot.slane %v590, 2
      %v887 = vor.u32 %v885, %v886
      %v888 = vsel %vm789, %v882, %v887
      %v889 = vrot.slane %v594, 1
      %v890 = vrot.slane %v596, 2
      %v891 = vor.u32 %v889, %v890
      %v892 = vshrl.u32 %v478, 16
      %v894 = vrot.slane %v892, 1
      %v895 = vrot.slane %v600, 2
      %v896 = vor.u32 %v894, %v895
      %v897 = vsel %vm789, %v891, %v896
      %v898 = vrot.slane %v604, 1
      %v899 = vrot.slane %v606, 2
      %v900 = vor.u32 %v898, %v899
      %v901 = vshrl.u32 %v479, 16
      %v903 = vrot.slane %v901, 1
      %v904 = vrot.slane %v610, 2
      %v905 = vor.u32 %v903, %v904
      %v906 = vsel %vm789, %v900, %v905
      %v907 = vrot.slane %v614, 1
      %v908 = vrot.slane %v616, 2
      %v909 = vor.u32 %v907, %v908
      %v910 = vshrl.u32 %v480, 16
      %v912 = vrot.slane %v910, 1
      %v913 = vrot.slane %v620, 2
      %v914 = vor.u32 %v912, %v913
      %v915 = vsel %vm789, %v909, %v914
      %v916 = vrot.slane %v624, 1
      %v917 = vrot.slane %v626, 2
      %v918 = vor.u32 %v916, %v917
      %v919 = vshrl.u32 %v481, 16
      %v921 = vrot.slane %v919, 1
      %v922 = vrot.slane %v630, 2
      %v923 = vor.u32 %v921, %v922
      %v924 = vsel %vm789, %v918, %v923
      %v925 = vrot.slane %v634, 1
      %v926 = vrot.slane %v636, 2
      %v927 = vor.u32 %v925, %v926
      %v928 = vshrl.u32 %v482, 16
      %v930 = vrot.slane %v928, 1
      %v931 = vrot.slane %v640, 2
      %v932 = vor.u32 %v930, %v931
      %v933 = vsel %vm789, %v927, %v932
      %v950 = vmax.bf16 %v773, %v798
      %v951 = vmax.bf16 %v774, %v807
      %v952 = vmax.bf16 %v775, %v816
      %v953 = vmax.bf16 %v776, %v825
      %v954 = vmax.bf16 %v777, %v834
      %v955 = vmax.bf16 %v778, %v843
      %v956 = vmax.bf16 %v779, %v852
      %v957 = vmax.bf16 %v780, %v861
      %v958 = vmax.bf16 %v781, %v870
      %v959 = vmax.bf16 %v782, %v879
      %v960 = vmax.bf16 %v783, %v888
      %v961 = vmax.bf16 %v784, %v897
      %v962 = vmax.bf16 %v785, %v906
      %v963 = vmax.bf16 %v786, %v915
      %v964 = vmax.bf16 %v787, %v924
      %v965 = vmax.bf16 %v788, %v933
      %vm966 = vcmask 1045504
      %v967 = vrot.slane %v420, 2
      %v968 = vrot.slane %v467, 2
      %v969 = vsel %vm966, %v967, %v968
      %v970 = vrot.slane %v423, 2
      %v971 = vrot.slane %v468, 2
      %v972 = vsel %vm966, %v970, %v971
      %v973 = vrot.slane %v426, 2
      %v974 = vrot.slane %v469, 2
      %v975 = vsel %vm966, %v973, %v974
      %v976 = vrot.slane %v429, 2
      %v977 = vrot.slane %v470, 2
      %v978 = vsel %vm966, %v976, %v977
      %v979 = vrot.slane %v432, 2
      %v980 = vrot.slane %v471, 2
      %v981 = vsel %vm966, %v979, %v980
      %v982 = vrot.slane %v435, 2
      %v983 = vrot.slane %v472, 2
      %v984 = vsel %vm966, %v982, %v983
      %v985 = vrot.slane %v438, 2
      %v986 = vrot.slane %v473, 2
      %v987 = vsel %vm966, %v985, %v986
      %v988 = vrot.slane %v441, 2
      %v989 = vrot.slane %v474, 2
      %v990 = vsel %vm966, %v988, %v989
      %v991 = vrot.slane %v444, 2
      %v992 = vrot.slane %v475, 2
      %v993 = vsel %vm966, %v991, %v992
      %v994 = vrot.slane %v447, 2
      %v995 = vrot.slane %v476, 2
      %v996 = vsel %vm966, %v994, %v995
      %v997 = vrot.slane %v450, 2
      %v998 = vrot.slane %v477, 2
      %v999 = vsel %vm966, %v997, %v998
      %v1000 = vrot.slane %v453, 2
      %v1001 = vrot.slane %v478, 2
      %v1002 = vsel %vm966, %v1000, %v1001
      %v1003 = vrot.slane %v456, 2
      %v1004 = vrot.slane %v479, 2
      %v1005 = vsel %vm966, %v1003, %v1004
      %v1006 = vrot.slane %v459, 2
      %v1007 = vrot.slane %v480, 2
      %v1008 = vsel %vm966, %v1006, %v1007
      %v1009 = vrot.slane %v462, 2
      %v1010 = vrot.slane %v481, 2
      %v1011 = vsel %vm966, %v1009, %v1010
      %v1012 = vrot.slane %v465, 2
      %v1013 = vrot.slane %v482, 2
      %v1014 = vsel %vm966, %v1012, %v1013
      %v1031 = vmax.bf16 %v950, %v969
      %v1032 = vmax.bf16 %v951, %v972
      %v1033 = vmax.bf16 %v952, %v975
      %v1034 = vmax.bf16 %v953, %v978
      %v1035 = vmax.bf16 %v954, %v981
      %v1036 = vmax.bf16 %v955, %v984
      %v1037 = vmax.bf16 %v956, %v987
      %v1038 = vmax.bf16 %v957, %v990
      %v1039 = vmax.bf16 %v958, %v993
      %v1040 = vmax.bf16 %v959, %v996
      %v1041 = vmax.bf16 %v960, %v999
      %v1042 = vmax.bf16 %v961, %v1002
      %v1043 = vmax.bf16 %v962, %v1005
      %v1044 = vmax.bf16 %v963, %v1008
      %v1045 = vmax.bf16 %v964, %v1011
      %v1046 = vmax.bf16 %v965, %v1014
      %s1047 = scalar_lea.vmem %s1, 16
      %v1048 = vld [vmem:[%s1047] sm:$0xf]
      %v1049 = vld [vmem:[%s1047 + $0x4] sm:$0xf]
      %v1050 = vld [vmem:[%s1047 + $0x8] sm:$0xf]
      %v1051 = vld [vmem:[%s1047 + $0xc] sm:$0xf]
      %v1056 = vunpack.c.l.b16 %v1048
      %v1057 = vunpack.c.l.b16 %v1049
      %v1058 = vunpack.c.l.b16 %v1050
      %v1059 = vunpack.c.l.b16 %v1051
      %v1060 = vpack.c.b16 %v1057, %v1056
      %v1061 = vpack.c.b16 %v1059, %v1058
      %vm1062 = vcmask 31744
      %v1064 = vsel %vm1062, %v1060, 0
      %v1067 = vsel %vm1062, %v1061, 0
      %v1070 = vsel %vm1062, %v1031, 0
      %v1073 = vsel %vm1062, %v1032, 0
      %v1076 = vsel %vm1062, %v1033, 0
      %v1079 = vsel %vm1062, %v1034, 0
      %v1082 = vsel %vm1062, %v1035, 0
      %v1085 = vsel %vm1062, %v1036, 0
      %v1088 = vsel %vm1062, %v1037, 0
      %v1091 = vsel %vm1062, %v1038, 0
      %v1094 = vsel %vm1062, %v1039, 0
      %v1097 = vsel %vm1062, %v1040, 0
      %v1100 = vsel %vm1062, %v1041, 0
      %v1103 = vsel %vm1062, %v1042, 0
      %v1106 = vsel %vm1062, %v1043, 0
      %v1109 = vsel %vm1062, %v1044, 0
      %v1112 = vsel %vm1062, %v1045, 0
      %v1115 = vsel %vm1062, %v1046, 0
      %1117 = vmatprep.subr.bf16.mxu0 0
      %1118 = vmatpush1.bf16.xpose.msra.mxu0 %v1070
      %1119 = vmatprep.subr.bf16.mxu0 0
      %1120 = vmatpush1.bf16.xpose.msra.mxu0 %v1073
      %1121 = vmatprep.subr.bf16.mxu0 0
      %1122 = vmatpush1.bf16.xpose.msra.mxu0 %v1076
      %1123 = vmatprep.subr.bf16.mxu0 0
      %1124 = vmatpush1.bf16.xpose.msra.mxu0 %v1079
      %1125 = vmatprep.subr.bf16.mxu0 0
      %1126 = vmatpush1.bf16.xpose.msra.mxu0 %v1082
      %1127 = vmatprep.subr.bf16.mxu0 0
      %1128 = vmatpush1.bf16.xpose.msra.mxu0 %v1085
      %1129 = vmatprep.subr.bf16.mxu0 0
      %1130 = vmatpush1.bf16.xpose.msra.mxu0 %v1088
      %1131 = vmatprep.subr.bf16.mxu0 0
      %1132 = vmatpush1.bf16.xpose.msra.mxu0 %v1091
      %1133 = vmatprep.subr.bf16.mxu0 0
      %1134 = vmatpush1.bf16.xpose.msra.mxu0 %v1094
      %1135 = vmatprep.subr.bf16.mxu0 0
      %1136 = vmatpush1.bf16.xpose.msra.mxu0 %v1097
      %1137 = vmatprep.subr.bf16.mxu0 0
      %1138 = vmatpush1.bf16.xpose.msra.mxu0 %v1100
      %1139 = vmatprep.subr.bf16.mxu0 0
      %1140 = vmatpush1.bf16.xpose.msra.mxu0 %v1103
      %1141 = vmatprep.subr.bf16.mxu0 0
      %1142 = vmatpush1.bf16.xpose.msra.mxu0 %v1106
      %1143 = vmatprep.subr.bf16.mxu0 0
      %1144 = vmatpush1.bf16.xpose.msra.mxu0 %v1109
      %1145 = vmatprep.subr.bf16.mxu0 0
      %1146 = vmatpush1.bf16.xpose.msra.mxu0 %v1112
      %1147 = vmatprep.subr.bf16.mxu0 0
      %1148 = vmatpush1.bf16.xpose.msra.mxu0 %v1115
      %1149 = vmatprep.mubr.bf16.mxu0 0
      %1150 = vmatmul.mubr.bf16.gmra.mrb[0].mxu0 %v1064
      %v1151 = vpop.f32.mrb[0].mxu0
      %v1152 = vadd.f32 0.0, %v1151
      %v1153 = vpop.f32.mrb[0].mxu0
      %v1154 = vadd.f32 0.0, %v1153
      %v1155 = vpop.f32.mrb[0].mxu0
      %v1156 = vadd.f32 0.0, %v1155
      %v1157 = vpop.f32.mrb[0].mxu0
      %v1158 = vadd.f32 0.0, %v1157
      %1159 = vmatprep.mubr.bf16.mxu0 0
      %1160 = vmatmul.mubr.bf16.gmra.mrb[0].mxu0 %v1067
      %v1161 = vpop.f32.mrb[0].mxu0
      %v1162 = vadd.f32 0.0, %v1161
      %v1163 = vpop.f32.mrb[0].mxu0
      %v1164 = vadd.f32 0.0, %v1163
      %v1165 = vpop.f32.mrb[0].mxu0
      %v1166 = vadd.f32 0.0, %v1165
      %v1167 = vpop.f32.mrb[0].mxu0
      %v1168 = vadd.f32 0.0, %v1167
      %1169 = vdwg.mxu0
      %v1174 = vunpack.c.l.b16 %v232
      %v1175 = vunpack.c.l.b16 %v233
      %v1176 = vunpack.c.l.b16 %v234
      %v1177 = vunpack.c.l.b16 %v235
      %v1178 = vpack.c.b16 %v1175, %v1174
      %v1179 = vpack.c.b16 %v1177, %v1176
      %v1181 = vsel %vm1062, %v1178, 0
      %v1184 = vsel %vm1062, %v1179, 0
      %v1187 = vsel %vm1062, %v300, 0
      %v1190 = vsel %vm1062, %v301, 0
      %v1193 = vsel %vm1062, %v302, 0
      %v1196 = vsel %vm1062, %v303, 0
      %v1199 = vsel %vm1062, %v304, 0
      %v1202 = vsel %vm1062, %v305, 0
      %v1205 = vsel %vm1062, %v306, 0
      %v1208 = vsel %vm1062, %v307, 0
      %v1211 = vsel %vm1062, %v308, 0
      %v1214 = vsel %vm1062, %v309, 0
      %v1217 = vsel %vm1062, %v310, 0
      %v1220 = vsel %vm1062, %v311, 0
      %v1223 = vsel %vm1062, %v312, 0
      %v1226 = vsel %vm1062, %v313, 0
      %v1229 = vsel %vm1062, %v314, 0
      %v1232 = vsel %vm1062, %v315, 0
      %1234 = vmatprep.subr.bf16.mxu0 0
      %1235 = vmatpush1.bf16.xpose.msra.mxu0 %v1187
      %1236 = vmatprep.subr.bf16.mxu0 0
      %1237 = vmatpush1.bf16.xpose.msra.mxu0 %v1190
      %1238 = vmatprep.subr.bf16.mxu0 0
      %1239 = vmatpush1.bf16.xpose.msra.mxu0 %v1193
      %1240 = vmatprep.subr.bf16.mxu0 0
      %1241 = vmatpush1.bf16.xpose.msra.mxu0 %v1196
      %1242 = vmatprep.subr.bf16.mxu0 0
      %1243 = vmatpush1.bf16.xpose.msra.mxu0 %v1199
      %1244 = vmatprep.subr.bf16.mxu0 0
      %1245 = vmatpush1.bf16.xpose.msra.mxu0 %v1202
      %1246 = vmatprep.subr.bf16.mxu0 0
      %1247 = vmatpush1.bf16.xpose.msra.mxu0 %v1205
      %1248 = vmatprep.subr.bf16.mxu0 0
      %1249 = vmatpush1.bf16.xpose.msra.mxu0 %v1208
      %1250 = vmatprep.subr.bf16.mxu0 0
      %1251 = vmatpush1.bf16.xpose.msra.mxu0 %v1211
      %1252 = vmatprep.subr.bf16.mxu0 0
      %1253 = vmatpush1.bf16.xpose.msra.mxu0 %v1214
      %1254 = vmatprep.subr.bf16.mxu0 0
      %1255 = vmatpush1.bf16.xpose.msra.mxu0 %v1217
      %1256 = vmatprep.subr.bf16.mxu0 0
      %1257 = vmatpush1.bf16.xpose.msra.mxu0 %v1220
      %1258 = vmatprep.subr.bf16.mxu0 0
      %1259 = vmatpush1.bf16.xpose.msra.mxu0 %v1223
      %1260 = vmatprep.subr.bf16.mxu0 0
      %1261 = vmatpush1.bf16.xpose.msra.mxu0 %v1226
      %1262 = vmatprep.subr.bf16.mxu0 0
      %1263 = vmatpush1.bf16.xpose.msra.mxu0 %v1229
      %1264 = vmatprep.subr.bf16.mxu0 0
      %1265 = vmatpush1.bf16.xpose.msra.mxu0 %v1232
      %1266 = vmatprep.mubr.bf16.mxu0 0
      %1267 = vmatmul.mubr.bf16.gmra.mrb[0].mxu0 %v1181
      %v1268 = vpop.f32.mrb[0].mxu0
      %v1269 = vadd.f32 %v1152, %v1268
      %v1270 = vpop.f32.mrb[0].mxu0
      %v1271 = vadd.f32 %v1154, %v1270
      %v1272 = vpop.f32.mrb[0].mxu0
      %v1273 = vadd.f32 %v1156, %v1272
      %v1274 = vpop.f32.mrb[0].mxu0
      %v1275 = vadd.f32 %v1158, %v1274
      %1276 = vmatprep.mubr.bf16.mxu0 0
      %1277 = vmatmul.mubr.bf16.gmra.mrb[0].mxu0 %v1184
      %v1278 = vpop.f32.mrb[0].mxu0
      %v1279 = vadd.f32 %v1162, %v1278
      %v1280 = vpop.f32.mrb[0].mxu0
      %v1281 = vadd.f32 %v1164, %v1280
      %v1282 = vpop.f32.mrb[0].mxu0
      %v1283 = vadd.f32 %v1166, %v1282
      %v1284 = vpop.f32.mrb[0].mxu0
      %v1285 = vadd.f32 %v1168, %v1284
      %1286 = vdwg.mxu0
      %v1287 = vmax.bf16 %v1031, %v1032
      %v1288 = vmax.bf16 %v1032, %v1033
      %v1289 = vmax.bf16 %v1033, %v1034
      %v1290 = vmax.bf16 %v1034, %v1035
      %v1291 = vmax.bf16 %v1035, %v1036
      %v1292 = vmax.bf16 %v1036, %v1037
      %v1293 = vmax.bf16 %v1037, %v1038
      %v1294 = vmax.bf16 %v1038, %v1039
      %v1295 = vmax.bf16 %v1039, %v1040
      %v1296 = vmax.bf16 %v1040, %v1041
      %v1297 = vmax.bf16 %v1041, %v1042
      %v1298 = vmax.bf16 %v1042, %v1043
      %v1299 = vmax.bf16 %v1043, %v1044
      %v1300 = vmax.bf16 %v1044, %v1045
      %v1301 = vmax.bf16 %v1287, %v1033
      %v1302 = vmax.bf16 %v1288, %v1034
      %v1303 = vmax.bf16 %v1289, %v1035
      %v1304 = vmax.bf16 %v1290, %v1036
      %v1305 = vmax.bf16 %v1291, %v1037
      %v1306 = vmax.bf16 %v1292, %v1038
      %v1307 = vmax.bf16 %v1293, %v1039
      %v1308 = vmax.bf16 %v1294, %v1040
      %v1309 = vmax.bf16 %v1295, %v1041
      %v1310 = vmax.bf16 %v1296, %v1042
      %v1311 = vmax.bf16 %v1297, %v1043
      %v1312 = vmax.bf16 %v1298, %v1044
      %v1313 = vmax.bf16 %v1299, %v1045
      %v1314 = vmax.bf16 %v1300, %v1046
      %v1315 = vmax.bf16 %v1301, %v1034
      %v1316 = vmax.bf16 %v1302, %v1035
      %v1317 = vmax.bf16 %v1303, %v1036
      %v1318 = vmax.bf16 %v1304, %v1037
      %v1319 = vmax.bf16 %v1305, %v1038
      %v1320 = vmax.bf16 %v1306, %v1039
      %v1321 = vmax.bf16 %v1307, %v1040
      %v1322 = vmax.bf16 %v1308, %v1041
      %v1323 = vmax.bf16 %v1309, %v1042
      %v1324 = vmax.bf16 %v1310, %v1043
      %v1325 = vmax.bf16 %v1311, %v1044
      %v1326 = vmax.bf16 %v1312, %v1045
      %v1327 = vmax.bf16 %v1313, %v1046
      %v1328 = vmax.bf16 %v1315, %v1035
      %v1329 = vmax.bf16 %v1316, %v1036
      %v1330 = vmax.bf16 %v1317, %v1037
      %v1331 = vmax.bf16 %v1318, %v1038
      %v1332 = vmax.bf16 %v1319, %v1039
      %v1333 = vmax.bf16 %v1320, %v1040
      %v1334 = vmax.bf16 %v1321, %v1041
      %v1335 = vmax.bf16 %v1322, %v1042
      %v1336 = vmax.bf16 %v1323, %v1043
      %v1337 = vmax.bf16 %v1324, %v1044
      %v1338 = vmax.bf16 %v1325, %v1045
      %v1339 = vmax.bf16 %v1326, %v1046
      %v1356 = vrot.slane %v1301, 7
      %v1357 = vrot.slane %v1315, 7
      %v1358 = vrot.slane %v1328, 7
      %v1359 = vrot.slane %v1329, 7
      %v1360 = vrot.slane %v1330, 7
      %v1361 = vrot.slane %v1331, 7
      %v1362 = vrot.slane %v1332, 7
      %v1363 = vrot.slane %v1333, 7
      %v1364 = vrot.slane %v1334, 7
      %v1365 = vrot.slane %v1335, 7
      %v1366 = vrot.slane %v1336, 7
      %v1367 = vrot.slane %v1337, 7
      %v1368 = vrot.slane %v1338, 7
      %v1369 = vrot.slane %v1339, 7
      %v1370 = vrot.slane %v1327, 7
      %v1371 = vrot.slane %v1314, 7
      %v1373 = vsel %vm417, 4286644096, %v1356
      %v1376 = vsel %vm417, 4286644096, %v1357
      %v1379 = vsel %vm417, 4286644096, %v1358
      %v1382 = vsel %vm417, 4286644096, %v1359
      %v1385 = vsel %vm417, 4286644096, %v1360
      %v1388 = vsel %vm417, 4286644096, %v1361
      %v1391 = vsel %vm417, 4286644096, %v1362
      %v1394 = vsel %vm417, 4286644096, %v1363
      %v1397 = vsel %vm417, 4286644096, %v1364
      %v1400 = vsel %vm417, 4286644096, %v1365
      %v1403 = vsel %vm417, 4286644096, %v1366
      %v1406 = vsel %vm417, 4286644096, %v1367
      %v1409 = vsel %vm417, 4286644096, %v1368
      %v1412 = vsel %vm417, 4286644096, %v1369
      %v1415 = vsel %vm417, 4286644096, %v1370
      %v1418 = vsel %vm417, 4286644096, %v1371
      %v1420 = vsel %vm417, %v1356, 4286644096
      %v1421 = vsel %vm417, %v1357, 4286644096
      %v1422 = vsel %vm417, %v1358, 4286644096
      %v1423 = vsel %vm417, %v1359, 4286644096
      %v1424 = vsel %vm417, %v1360, 4286644096
      %v1425 = vsel %vm417, %v1361, 4286644096
      %v1426 = vsel %vm417, %v1362, 4286644096
      %v1427 = vsel %vm417, %v1363, 4286644096
      %v1428 = vsel %vm417, %v1364, 4286644096
      %v1429 = vsel %vm417, %v1365, 4286644096
      %v1430 = vsel %vm417, %v1366, 4286644096
      %v1431 = vsel %vm417, %v1367, 4286644096
      %v1432 = vsel %vm417, %v1368, 4286644096
      %v1433 = vsel %vm417, %v1369, 4286644096
      %v1434 = vsel %vm417, %v1370, 4286644096
      %v1435 = vsel %vm417, %v1371, 4286644096
      %v1436 = vshrl.u32 %v1373, 16
      %v1438 = vshll.u32 %v1373, 16
      %v1440 = vrot.slane %v1438, 1
      %v1441 = vor.u32 %v1436, %v1440
      %v1442 = vshll.u32 %v1420, 16
      %v1444 = vrot.slane %v1442, 1
      %v1445 = vsel %vm483, %v1441, %v1444
      %v1446 = vshrl.u32 %v1376, 16
      %v1448 = vshll.u32 %v1376, 16
      %v1450 = vrot.slane %v1448, 1
      %v1451 = vor.u32 %v1446, %v1450
      %v1452 = vshll.u32 %v1421, 16
      %v1454 = vrot.slane %v1452, 1
      %v1455 = vsel %vm483, %v1451, %v1454
      %v1456 = vshrl.u32 %v1379, 16
      %v1458 = vshll.u32 %v1379, 16
      %v1460 = vrot.slane %v1458, 1
      %v1461 = vor.u32 %v1456, %v1460
      %v1462 = vshll.u32 %v1422, 16
      %v1464 = vrot.slane %v1462, 1
      %v1465 = vsel %vm483, %v1461, %v1464
      %v1466 = vshrl.u32 %v1382, 16
      %v1468 = vshll.u32 %v1382, 16
      %v1470 = vrot.slane %v1468, 1
      %v1471 = vor.u32 %v1466, %v1470
      %v1472 = vshll.u32 %v1423, 16
      %v1474 = vrot.slane %v1472, 1
      %v1475 = vsel %vm483, %v1471, %v1474
      %v1476 = vshrl.u32 %v1385, 16
      %v1478 = vshll.u32 %v1385, 16
      %v1480 = vrot.slane %v1478, 1
      %v1481 = vor.u32 %v1476, %v1480
      %v1482 = vshll.u32 %v1424, 16
      %v1484 = vrot.slane %v1482, 1
      %v1485 = vsel %vm483, %v1481, %v1484
      %v1486 = vshrl.u32 %v1388, 16
      %v1488 = vshll.u32 %v1388, 16
      %v1490 = vrot.slane %v1488, 1
      %v1491 = vor.u32 %v1486, %v1490
      %v1492 = vshll.u32 %v1425, 16
      %v1494 = vrot.slane %v1492, 1
      %v1495 = vsel %vm483, %v1491, %v1494
      %v1496 = vshrl.u32 %v1391, 16
      %v1498 = vshll.u32 %v1391, 16
      %v1500 = vrot.slane %v1498, 1
      %v1501 = vor.u32 %v1496, %v1500
      %v1502 = vshll.u32 %v1426, 16
      %v1504 = vrot.slane %v1502, 1
      %v1505 = vsel %vm483, %v1501, %v1504
      %v1506 = vshrl.u32 %v1394, 16
      %v1508 = vshll.u32 %v1394, 16
      %v1510 = vrot.slane %v1508, 1
      %v1511 = vor.u32 %v1506, %v1510
      %v1512 = vshll.u32 %v1427, 16
      %v1514 = vrot.slane %v1512, 1
      %v1515 = vsel %vm483, %v1511, %v1514
      %v1516 = vshrl.u32 %v1397, 16
      %v1518 = vshll.u32 %v1397, 16
      %v1520 = vrot.slane %v1518, 1
      %v1521 = vor.u32 %v1516, %v1520
      %v1522 = vshll.u32 %v1428, 16
      %v1524 = vrot.slane %v1522, 1
      %v1525 = vsel %vm483, %v1521, %v1524
      %v1526 = vshrl.u32 %v1400, 16
      %v1528 = vshll.u32 %v1400, 16
      %v1530 = vrot.slane %v1528, 1
      %v1531 = vor.u32 %v1526, %v1530
      %v1532 = vshll.u32 %v1429, 16
      %v1534 = vrot.slane %v1532, 1
      %v1535 = vsel %vm483, %v1531, %v1534
      %v1536 = vshrl.u32 %v1403, 16
      %v1538 = vshll.u32 %v1403, 16
      %v1540 = vrot.slane %v1538, 1
      %v1541 = vor.u32 %v1536, %v1540
      %v1542 = vshll.u32 %v1430, 16
      %v1544 = vrot.slane %v1542, 1
      %v1545 = vsel %vm483, %v1541, %v1544
      %v1546 = vshrl.u32 %v1406, 16
      %v1548 = vshll.u32 %v1406, 16
      %v1550 = vrot.slane %v1548, 1
      %v1551 = vor.u32 %v1546, %v1550
      %v1552 = vshll.u32 %v1431, 16
      %v1554 = vrot.slane %v1552, 1
      %v1555 = vsel %vm483, %v1551, %v1554
      %v1556 = vshrl.u32 %v1409, 16
      %v1558 = vshll.u32 %v1409, 16
      %v1560 = vrot.slane %v1558, 1
      %v1561 = vor.u32 %v1556, %v1560
      %v1562 = vshll.u32 %v1432, 16
      %v1564 = vrot.slane %v1562, 1
      %v1565 = vsel %vm483, %v1561, %v1564
      %v1566 = vshrl.u32 %v1412, 16
      %v1568 = vshll.u32 %v1412, 16
      %v1570 = vrot.slane %v1568, 1
      %v1571 = vor.u32 %v1566, %v1570
      %v1572 = vshll.u32 %v1433, 16
      %v1574 = vrot.slane %v1572, 1
      %v1575 = vsel %vm483, %v1571, %v1574
      %v1576 = vshrl.u32 %v1415, 16
      %v1578 = vshll.u32 %v1415, 16
      %v1580 = vrot.slane %v1578, 1
      %v1581 = vor.u32 %v1576, %v1580
      %v1582 = vshll.u32 %v1434, 16
      %v1584 = vrot.slane %v1582, 1
      %v1585 = vsel %vm483, %v1581, %v1584
      %v1586 = vshrl.u32 %v1418, 16
      %v1588 = vshll.u32 %v1418, 16
      %v1590 = vrot.slane %v1588, 1
      %v1591 = vor.u32 %v1586, %v1590
      %v1592 = vshll.u32 %v1435, 16
      %v1594 = vrot.slane %v1592, 1
      %v1595 = vsel %vm483, %v1591, %v1594
      %v1612 = vmax.bf16 %v1373, %v1445
      %v1613 = vmax.bf16 %v1376, %v1455
      %v1614 = vmax.bf16 %v1379, %v1465
      %v1615 = vmax.bf16 %v1382, %v1475
      %v1616 = vmax.bf16 %v1385, %v1485
      %v1617 = vmax.bf16 %v1388, %v1495
      %v1618 = vmax.bf16 %v1391, %v1505
      %v1619 = vmax.bf16 %v1394, %v1515
      %v1620 = vmax.bf16 %v1397, %v1525
      %v1621 = vmax.bf16 %v1400, %v1535
      %v1622 = vmax.bf16 %v1403, %v1545
      %v1623 = vmax.bf16 %v1406, %v1555
      %v1624 = vmax.bf16 %v1409, %v1565
      %v1625 = vmax.bf16 %v1412, %v1575
      %v1626 = vmax.bf16 %v1415, %v1585
      %v1627 = vmax.bf16 %v1418, %v1595
      %v1660 = vrot.slane %v1373, 1
      %v1661 = vrot.slane %v1420, 1
      %v1662 = vsel %vm708, %v1660, %v1661
      %v1663 = vrot.slane %v1376, 1
      %v1664 = vrot.slane %v1421, 1
      %v1665 = vsel %vm708, %v1663, %v1664
      %v1666 = vrot.slane %v1379, 1
      %v1667 = vrot.slane %v1422, 1
      %v1668 = vsel %vm708, %v1666, %v1667
      %v1669 = vrot.slane %v1382, 1
      %v1670 = vrot.slane %v1423, 1
      %v1671 = vsel %vm708, %v1669, %v1670
      %v1672 = vrot.slane %v1385, 1
      %v1673 = vrot.slane %v1424, 1
      %v1674 = vsel %vm708, %v1672, %v1673
      %v1675 = vrot.slane %v1388, 1
      %v1676 = vrot.slane %v1425, 1
      %v1677 = vsel %vm708, %v1675, %v1676
      %v1678 = vrot.slane %v1391, 1
      %v1679 = vrot.slane %v1426, 1
      %v1680 = vsel %vm708, %v1678, %v1679
      %v1681 = vrot.slane %v1394, 1
      %v1682 = vrot.slane %v1427, 1
      %v1683 = vsel %vm708, %v1681, %v1682
      %v1684 = vrot.slane %v1397, 1
      %v1685 = vrot.slane %v1428, 1
      %v1686 = vsel %vm708, %v1684, %v1685
      %v1687 = vrot.slane %v1400, 1
      %v1688 = vrot.slane %v1429, 1
      %v1689 = vsel %vm708, %v1687, %v1688
      %v1690 = vrot.slane %v1403, 1
      %v1691 = vrot.slane %v1430, 1
      %v1692 = vsel %vm708, %v1690, %v1691
      %v1693 = vrot.slane %v1406, 1
      %v1694 = vrot.slane %v1431, 1
      %v1695 = vsel %vm708, %v1693, %v1694
      %v1696 = vrot.slane %v1409, 1
      %v1697 = vrot.slane %v1432, 1
      %v1698 = vsel %vm708, %v1696, %v1697
      %v1699 = vrot.slane %v1412, 1
      %v1700 = vrot.slane %v1433, 1
      %v1701 = vsel %vm708, %v1699, %v1700
      %v1702 = vrot.slane %v1415, 1
      %v1703 = vrot.slane %v1434, 1
      %v1704 = vsel %vm708, %v1702, %v1703
      %v1705 = vrot.slane %v1418, 1
      %v1706 = vrot.slane %v1435, 1
      %v1707 = vsel %vm708, %v1705, %v1706
      %v1724 = vmax.bf16 %v1612, %v1662
      %v1725 = vmax.bf16 %v1613, %v1665
      %v1726 = vmax.bf16 %v1614, %v1668
      %v1727 = vmax.bf16 %v1615, %v1671
      %v1728 = vmax.bf16 %v1616, %v1674
      %v1729 = vmax.bf16 %v1617, %v1677
      %v1730 = vmax.bf16 %v1618, %v1680
      %v1731 = vmax.bf16 %v1619, %v1683
      %v1732 = vmax.bf16 %v1620, %v1686
      %v1733 = vmax.bf16 %v1621, %v1689
      %v1734 = vmax.bf16 %v1622, %v1692
      %v1735 = vmax.bf16 %v1623, %v1695
      %v1736 = vmax.bf16 %v1624, %v1698
      %v1737 = vmax.bf16 %v1625, %v1701
      %v1738 = vmax.bf16 %v1626, %v1704
      %v1739 = vmax.bf16 %v1627, %v1707
      %v1740 = vrot.slane %v1436, 1
      %v1741 = vrot.slane %v1438, 2
      %v1742 = vor.u32 %v1740, %v1741
      %v1743 = vshrl.u32 %v1420, 16
      %v1745 = vrot.slane %v1743, 1
      %v1746 = vrot.slane %v1442, 2
      %v1747 = vor.u32 %v1745, %v1746
      %v1748 = vsel %vm789, %v1742, %v1747
      %v1749 = vrot.slane %v1446, 1
      %v1750 = vrot.slane %v1448, 2
      %v1751 = vor.u32 %v1749, %v1750
      %v1752 = vshrl.u32 %v1421, 16
      %v1754 = vrot.slane %v1752, 1
      %v1755 = vrot.slane %v1452, 2
      %v1756 = vor.u32 %v1754, %v1755
      %v1757 = vsel %vm789, %v1751, %v1756
      %v1758 = vrot.slane %v1456, 1
      %v1759 = vrot.slane %v1458, 2
      %v1760 = vor.u32 %v1758, %v1759
      %v1761 = vshrl.u32 %v1422, 16
      %v1763 = vrot.slane %v1761, 1
      %v1764 = vrot.slane %v1462, 2
      %v1765 = vor.u32 %v1763, %v1764
      %v1766 = vsel %vm789, %v1760, %v1765
      %v1767 = vrot.slane %v1466, 1
      %v1768 = vrot.slane %v1468, 2
      %v1769 = vor.u32 %v1767, %v1768
      %v1770 = vshrl.u32 %v1423, 16
      %v1772 = vrot.slane %v1770, 1
      %v1773 = vrot.slane %v1472, 2
      %v1774 = vor.u32 %v1772, %v1773
      %v1775 = vsel %vm789, %v1769, %v1774
      %v1776 = vrot.slane %v1476, 1
      %v1777 = vrot.slane %v1478, 2
      %v1778 = vor.u32 %v1776, %v1777
      %v1779 = vshrl.u32 %v1424, 16
      %v1781 = vrot.slane %v1779, 1
      %v1782 = vrot.slane %v1482, 2
      %v1783 = vor.u32 %v1781, %v1782
      %v1784 = vsel %vm789, %v1778, %v1783
      %v1785 = vrot.slane %v1486, 1
      %v1786 = vrot.slane %v1488, 2
      %v1787 = vor.u32 %v1785, %v1786
      %v1788 = vshrl.u32 %v1425, 16
      %v1790 = vrot.slane %v1788, 1
      %v1791 = vrot.slane %v1492, 2
      %v1792 = vor.u32 %v1790, %v1791
      %v1793 = vsel %vm789, %v1787, %v1792
      %v1794 = vrot.slane %v1496, 1
      %v1795 = vrot.slane %v1498, 2
      %v1796 = vor.u32 %v1794, %v1795
      %v1797 = vshrl.u32 %v1426, 16
      %v1799 = vrot.slane %v1797, 1
      %v1800 = vrot.slane %v1502, 2
      %v1801 = vor.u32 %v1799, %v1800
      %v1802 = vsel %vm789, %v1796, %v1801
      %v1803 = vrot.slane %v1506, 1
      %v1804 = vrot.slane %v1508, 2
      %v1805 = vor.u32 %v1803, %v1804
      %v1806 = vshrl.u32 %v1427, 16
      %v1808 = vrot.slane %v1806, 1
      %v1809 = vrot.slane %v1512, 2
      %v1810 = vor.u32 %v1808, %v1809
      %v1811 = vsel %vm789, %v1805, %v1810
      %v1812 = vrot.slane %v1516, 1
      %v1813 = vrot.slane %v1518, 2
      %v1814 = vor.u32 %v1812, %v1813
      %v1815 = vshrl.u32 %v1428, 16
      %v1817 = vrot.slane %v1815, 1
      %v1818 = vrot.slane %v1522, 2
      %v1819 = vor.u32 %v1817, %v1818
      %v1820 = vsel %vm789, %v1814, %v1819
      %v1821 = vrot.slane %v1526, 1
      %v1822 = vrot.slane %v1528, 2
      %v1823 = vor.u32 %v1821, %v1822
      %v1824 = vshrl.u32 %v1429, 16
      %v1826 = vrot.slane %v1824, 1
      %v1827 = vrot.slane %v1532, 2
      %v1828 = vor.u32 %v1826, %v1827
      %v1829 = vsel %vm789, %v1823, %v1828
      %v1830 = vrot.slane %v1536, 1
      %v1831 = vrot.slane %v1538, 2
      %v1832 = vor.u32 %v1830, %v1831
      %v1833 = vshrl.u32 %v1430, 16
      %v1835 = vrot.slane %v1833, 1
      %v1836 = vrot.slane %v1542, 2
      %v1837 = vor.u32 %v1835, %v1836
      %v1838 = vsel %vm789, %v1832, %v1837
      %v1839 = vrot.slane %v1546, 1
      %v1840 = vrot.slane %v1548, 2
      %v1841 = vor.u32 %v1839, %v1840
      %v1842 = vshrl.u32 %v1431, 16
      %v1844 = vrot.slane %v1842, 1
      %v1845 = vrot.slane %v1552, 2
      %v1846 = vor.u32 %v1844, %v1845
      %v1847 = vsel %vm789, %v1841, %v1846
      %v1848 = vrot.slane %v1556, 1
      %v1849 = vrot.slane %v1558, 2
      %v1850 = vor.u32 %v1848, %v1849
      %v1851 = vshrl.u32 %v1432, 16
      %v1853 = vrot.slane %v1851, 1
      %v1854 = vrot.slane %v1562, 2
      %v1855 = vor.u32 %v1853, %v1854
      %v1856 = vsel %vm789, %v1850, %v1855
      %v1857 = vrot.slane %v1566, 1
      %v1858 = vrot.slane %v1568, 2
      %v1859 = vor.u32 %v1857, %v1858
      %v1860 = vshrl.u32 %v1433, 16
      %v1862 = vrot.slane %v1860, 1
      %v1863 = vrot.slane %v1572, 2
      %v1864 = vor.u32 %v1862, %v1863
      %v1865 = vsel %vm789, %v1859, %v1864
      %v1866 = vrot.slane %v1576, 1
      %v1867 = vrot.slane %v1578, 2
      %v1868 = vor.u32 %v1866, %v1867
      %v1869 = vshrl.u32 %v1434, 16
      %v1871 = vrot.slane %v1869, 1
      %v1872 = vrot.slane %v1582, 2
      %v1873 = vor.u32 %v1871, %v1872
      %v1874 = vsel %vm789, %v1868, %v1873
      %v1875 = vrot.slane %v1586, 1
      %v1876 = vrot.slane %v1588, 2
      %v1877 = vor.u32 %v1875, %v1876
      %v1878 = vshrl.u32 %v1435, 16
      %v1880 = vrot.slane %v1878, 1
      %v1881 = vrot.slane %v1592, 2
      %v1882 = vor.u32 %v1880, %v1881
      %v1883 = vsel %vm789, %v1877, %v1882
      %v1900 = vmax.bf16 %v1724, %v1748
      %v1901 = vmax.bf16 %v1725, %v1757
      %v1902 = vmax.bf16 %v1726, %v1766
      %v1903 = vmax.bf16 %v1727, %v1775
      %v1904 = vmax.bf16 %v1728, %v1784
      %v1905 = vmax.bf16 %v1729, %v1793
      %v1906 = vmax.bf16 %v1730, %v1802
      %v1907 = vmax.bf16 %v1731, %v1811
      %v1908 = vmax.bf16 %v1732, %v1820
      %v1909 = vmax.bf16 %v1733, %v1829
      %v1910 = vmax.bf16 %v1734, %v1838
      %v1911 = vmax.bf16 %v1735, %v1847
      %v1912 = vmax.bf16 %v1736, %v1856
      %v1913 = vmax.bf16 %v1737, %v1865
      %v1914 = vmax.bf16 %v1738, %v1874
      %v1915 = vmax.bf16 %v1739, %v1883
      %v1916 = vrot.slane %v1373, 2
      %v1917 = vrot.slane %v1420, 2
      %v1918 = vsel %vm966, %v1916, %v1917
      %v1919 = vrot.slane %v1376, 2
      %v1920 = vrot.slane %v1421, 2
      %v1921 = vsel %vm966, %v1919, %v1920
      %v1922 = vrot.slane %v1379, 2
      %v1923 = vrot.slane %v1422, 2
      %v1924 = vsel %vm966, %v1922, %v1923
      %v1925 = vrot.slane %v1382, 2
      %v1926 = vrot.slane %v1423, 2
      %v1927 = vsel %vm966, %v1925, %v1926
      %v1928 = vrot.slane %v1385, 2
      %v1929 = vrot.slane %v1424, 2
      %v1930 = vsel %vm966, %v1928, %v1929
      %v1931 = vrot.slane %v1388, 2
      %v1932 = vrot.slane %v1425, 2
      %v1933 = vsel %vm966, %v1931, %v1932
      %v1934 = vrot.slane %v1391, 2
      %v1935 = vrot.slane %v1426, 2
      %v1936 = vsel %vm966, %v1934, %v1935
      %v1937 = vrot.slane %v1394, 2
      %v1938 = vrot.slane %v1427, 2
      %v1939 = vsel %vm966, %v1937, %v1938
      %v1940 = vrot.slane %v1397, 2
      %v1941 = vrot.slane %v1428, 2
      %v1942 = vsel %vm966, %v1940, %v1941
      %v1943 = vrot.slane %v1400, 2
      %v1944 = vrot.slane %v1429, 2
      %v1945 = vsel %vm966, %v1943, %v1944
      %v1946 = vrot.slane %v1403, 2
      %v1947 = vrot.slane %v1430, 2
      %v1948 = vsel %vm966, %v1946, %v1947
      %v1949 = vrot.slane %v1406, 2
      %v1950 = vrot.slane %v1431, 2
      %v1951 = vsel %vm966, %v1949, %v1950
      %v1952 = vrot.slane %v1409, 2
      %v1953 = vrot.slane %v1432, 2
      %v1954 = vsel %vm966, %v1952, %v1953
      %v1955 = vrot.slane %v1412, 2
      %v1956 = vrot.slane %v1433, 2
      %v1957 = vsel %vm966, %v1955, %v1956
      %v1958 = vrot.slane %v1415, 2
      %v1959 = vrot.slane %v1434, 2
      %v1960 = vsel %vm966, %v1958, %v1959
      %v1961 = vrot.slane %v1418, 2
      %v1962 = vrot.slane %v1435, 2
      %v1963 = vsel %vm966, %v1961, %v1962
      %v1980 = vmax.bf16 %v1900, %v1918
      %v1981 = vmax.bf16 %v1901, %v1921
      %v1982 = vmax.bf16 %v1902, %v1924
      %v1983 = vmax.bf16 %v1903, %v1927
      %v1984 = vmax.bf16 %v1904, %v1930
      %v1985 = vmax.bf16 %v1905, %v1933
      %v1986 = vmax.bf16 %v1906, %v1936
      %v1987 = vmax.bf16 %v1907, %v1939
      %v1988 = vmax.bf16 %v1908, %v1942
      %v1989 = vmax.bf16 %v1909, %v1945
      %v1990 = vmax.bf16 %v1910, %v1948
      %v1991 = vmax.bf16 %v1911, %v1951
      %v1992 = vmax.bf16 %v1912, %v1954
      %v1993 = vmax.bf16 %v1913, %v1957
      %v1994 = vmax.bf16 %v1914, %v1960
      %v1995 = vmax.bf16 %v1915, %v1963
      %s1996 = scalar_lea.vmem %s1, 32
      %v1997 = vld [vmem:[%s1996] sm:$0xf]
      %v1998 = vld [vmem:[%s1996 + $0x4] sm:$0xf]
      %v1999 = vld [vmem:[%s1996 + $0x8] sm:$0xf]
      %v2000 = vld [vmem:[%s1996 + $0xc] sm:$0xf]
      %v2005 = vunpack.c.l.b16 %v1997
      %v2006 = vunpack.c.l.b16 %v1998
      %v2007 = vunpack.c.l.b16 %v1999
      %v2008 = vunpack.c.l.b16 %v2000
      %v2009 = vpack.c.b16 %v2006, %v2005
      %v2010 = vpack.c.b16 %v2008, %v2007
      %v2012 = vsel %vm1062, %v2009, 0
      %v2015 = vsel %vm1062, %v2010, 0
      %v2018 = vsel %vm1062, %v1980, 0
      %v2021 = vsel %vm1062, %v1981, 0
      %v2024 = vsel %vm1062, %v1982, 0
      %v2027 = vsel %vm1062, %v1983, 0
      %v2030 = vsel %vm1062, %v1984, 0
      %v2033 = vsel %vm1062, %v1985, 0
      %v2036 = vsel %vm1062, %v1986, 0
      %v2039 = vsel %vm1062, %v1987, 0
      %v2042 = vsel %vm1062, %v1988, 0
      %v2045 = vsel %vm1062, %v1989, 0
      %v2048 = vsel %vm1062, %v1990, 0
      %v2051 = vsel %vm1062, %v1991, 0
      %v2054 = vsel %vm1062, %v1992, 0
      %v2057 = vsel %vm1062, %v1993, 0
      %v2060 = vsel %vm1062, %v1994, 0
      %v2063 = vsel %vm1062, %v1995, 0
      %2065 = vmatprep.subr.bf16.mxu0 0
      %2066 = vmatpush1.bf16.xpose.msra.mxu0 %v2018
      %2067 = vmatprep.subr.bf16.mxu0 0
      %2068 = vmatpush1.bf16.xpose.msra.mxu0 %v2021
      %2069 = vmatprep.subr.bf16.mxu0 0
      %2070 = vmatpush1.bf16.xpose.msra.mxu0 %v2024
      %2071 = vmatprep.subr.bf16.mxu0 0
      %2072 = vmatpush1.bf16.xpose.msra.mxu0 %v2027
      %2073 = vmatprep.subr.bf16.mxu0 0
      %2074 = vmatpush1.bf16.xpose.msra.mxu0 %v2030
      %2075 = vmatprep.subr.bf16.mxu0 0
      %2076 = vmatpush1.bf16.xpose.msra.mxu0 %v2033
      %2077 = vmatprep.subr.bf16.mxu0 0
      %2078 = vmatpush1.bf16.xpose.msra.mxu0 %v2036
      %2079 = vmatprep.subr.bf16.mxu0 0
      %2080 = vmatpush1.bf16.xpose.msra.mxu0 %v2039
      %2081 = vmatprep.subr.bf16.mxu0 0
      %2082 = vmatpush1.bf16.xpose.msra.mxu0 %v2042
      %2083 = vmatprep.subr.bf16.mxu0 0
      %2084 = vmatpush1.bf16.xpose.msra.mxu0 %v2045
      %2085 = vmatprep.subr.bf16.mxu0 0
      %2086 = vmatpush1.bf16.xpose.msra.mxu0 %v2048
      %2087 = vmatprep.subr.bf16.mxu0 0
      %2088 = vmatpush1.bf16.xpose.msra.mxu0 %v2051
      %2089 = vmatprep.subr.bf16.mxu0 0
      %2090 = vmatpush1.bf16.xpose.msra.mxu0 %v2054
      %2091 = vmatprep.subr.bf16.mxu0 0
      %2092 = vmatpush1.bf16.xpose.msra.mxu0 %v2057
      %2093 = vmatprep.subr.bf16.mxu0 0
      %2094 = vmatpush1.bf16.xpose.msra.mxu0 %v2060
      %2095 = vmatprep.subr.bf16.mxu0 0
      %2096 = vmatpush1.bf16.xpose.msra.mxu0 %v2063
      %2097 = vmatprep.mubr.bf16.mxu0 0
      %2098 = vmatmul.mubr.bf16.gmra.mrb[0].mxu0 %v2012
      %v2099 = vpop.f32.mrb[0].mxu0
      %v2100 = vadd.f32 0.0, %v2099
      %v2101 = vpop.f32.mrb[0].mxu0
      %v2102 = vadd.f32 0.0, %v2101
      %v2103 = vpop.f32.mrb[0].mxu0
      %v2104 = vadd.f32 0.0, %v2103
      %v2105 = vpop.f32.mrb[0].mxu0
      %v2106 = vadd.f32 0.0, %v2105
      %2107 = vmatprep.mubr.bf16.mxu0 0
      %2108 = vmatmul.mubr.bf16.gmra.mrb[0].mxu0 %v2015
      %v2109 = vpop.f32.mrb[0].mxu0
      %v2110 = vadd.f32 0.0, %v2109
      %v2111 = vpop.f32.mrb[0].mxu0
      %v2112 = vadd.f32 0.0, %v2111
      %v2113 = vpop.f32.mrb[0].mxu0
      %v2114 = vadd.f32 0.0, %v2113
      %v2115 = vpop.f32.mrb[0].mxu0
      %v2116 = vadd.f32 0.0, %v2115
      %2117 = vdwg.mxu0
      %v2118 = vadd.f32 %v1269, %v2100
      %v2119 = vadd.f32 %v1271, %v2102
      %v2120 = vadd.f32 %v1273, %v2104
      %v2121 = vadd.f32 %v1275, %v2106
      %v2122 = vadd.f32 %v1279, %v2110
      %v2123 = vadd.f32 %v1281, %v2112
      %v2124 = vadd.f32 %v1283, %v2114
      %v2125 = vadd.f32 %v1285, %v2116
      %v2126 = vmax.bf16 %v1980, %v1981
      %v2127 = vmax.bf16 %v1981, %v1982
      %v2128 = vmax.bf16 %v1982, %v1983
      %v2129 = vmax.bf16 %v1983, %v1984
      %v2130 = vmax.bf16 %v1984, %v1985
      %v2131 = vmax.bf16 %v1985, %v1986
      %v2132 = vmax.bf16 %v1986, %v1987
      %v2133 = vmax.bf16 %v1987, %v1988
      %v2134 = vmax.bf16 %v1988, %v1989
      %v2135 = vmax.bf16 %v1989, %v1990
      %v2136 = vmax.bf16 %v1990, %v1991
      %v2137 = vmax.bf16 %v1991, %v1992
      %v2138 = vmax.bf16 %v1992, %v1993
      %v2139 = vmax.bf16 %v1993, %v1994
      %v2140 = vmax.bf16 %v2126, %v1982
      %v2141 = vmax.bf16 %v2127, %v1983
      %v2142 = vmax.bf16 %v2128, %v1984
      %v2143 = vmax.bf16 %v2129, %v1985
      %v2144 = vmax.bf16 %v2130, %v1986
      %v2145 = vmax.bf16 %v2131, %v1987
      %v2146 = vmax.bf16 %v2132, %v1988
      %v2147 = vmax.bf16 %v2133, %v1989
      %v2148 = vmax.bf16 %v2134, %v1990
      %v2149 = vmax.bf16 %v2135, %v1991
      %v2150 = vmax.bf16 %v2136, %v1992
      %v2151 = vmax.bf16 %v2137, %v1993
      %v2152 = vmax.bf16 %v2138, %v1994
      %v2153 = vmax.bf16 %v2139, %v1995
      %v2154 = vmax.bf16 %v2140, %v1983
      %v2155 = vmax.bf16 %v2141, %v1984
      %v2156 = vmax.bf16 %v2142, %v1985
      %v2157 = vmax.bf16 %v2143, %v1986
      %v2158 = vmax.bf16 %v2144, %v1987
      %v2159 = vmax.bf16 %v2145, %v1988
      %v2160 = vmax.bf16 %v2146, %v1989
      %v2161 = vmax.bf16 %v2147, %v1990
      %v2162 = vmax.bf16 %v2148, %v1991
      %v2163 = vmax.bf16 %v2149, %v1992
      %v2164 = vmax.bf16 %v2150, %v1993
      %v2165 = vmax.bf16 %v2151, %v1994
      %v2166 = vmax.bf16 %v2152, %v1995
      %v2167 = vmax.bf16 %v2154, %v1984
      %v2168 = vmax.bf16 %v2155, %v1985
      %v2169 = vmax.bf16 %v2156, %v1986
      %v2170 = vmax.bf16 %v2157, %v1987
      %v2171 = vmax.bf16 %v2158, %v1988
      %v2172 = vmax.bf16 %v2159, %v1989
      %v2173 = vmax.bf16 %v2160, %v1990
      %v2174 = vmax.bf16 %v2161, %v1991
      %v2175 = vmax.bf16 %v2162, %v1992
      %v2176 = vmax.bf16 %v2163, %v1993
      %v2177 = vmax.bf16 %v2164, %v1994
      %v2178 = vmax.bf16 %v2165, %v1995
      %v2195 = vrot.slane %v2140, 7
      %v2196 = vrot.slane %v2154, 7
      %v2197 = vrot.slane %v2167, 7
      %v2198 = vrot.slane %v2168, 7
      %v2199 = vrot.slane %v2169, 7
      %v2200 = vrot.slane %v2170, 7
      %v2201 = vrot.slane %v2171, 7
      %v2202 = vrot.slane %v2172, 7
      %v2203 = vrot.slane %v2173, 7
      %v2204 = vrot.slane %v2174, 7
      %v2205 = vrot.slane %v2175, 7
      %v2206 = vrot.slane %v2176, 7
      %v2207 = vrot.slane %v2177, 7
      %v2208 = vrot.slane %v2178, 7
      %v2209 = vrot.slane %v2166, 7
      %v2210 = vrot.slane %v2153, 7
      %v2212 = vsel %vm417, 4286644096, %v2195
      %v2215 = vsel %vm417, 4286644096, %v2196
      %v2218 = vsel %vm417, 4286644096, %v2197
      %v2221 = vsel %vm417, 4286644096, %v2198
      %v2224 = vsel %vm417, 4286644096, %v2199
      %v2227 = vsel %vm417, 4286644096, %v2200
      %v2230 = vsel %vm417, 4286644096, %v2201
      %v2233 = vsel %vm417, 4286644096, %v2202
      %v2236 = vsel %vm417, 4286644096, %v2203
      %v2239 = vsel %vm417, 4286644096, %v2204
      %v2242 = vsel %vm417, 4286644096, %v2205
      %v2245 = vsel %vm417, 4286644096, %v2206
      %v2248 = vsel %vm417, 4286644096, %v2207
      %v2251 = vsel %vm417, 4286644096, %v2208
      %v2254 = vsel %vm417, 4286644096, %v2209
      %v2257 = vsel %vm417, 4286644096, %v2210
      %v2259 = vsel %vm417, %v2195, 4286644096
      %v2260 = vsel %vm417, %v2196, 4286644096
      %v2261 = vsel %vm417, %v2197, 4286644096
      %v2262 = vsel %vm417, %v2198, 4286644096
      %v2263 = vsel %vm417, %v2199, 4286644096
      %v2264 = vsel %vm417, %v2200, 4286644096
      %v2265 = vsel %vm417, %v2201, 4286644096
      %v2266 = vsel %vm417, %v2202, 4286644096
      %v2267 = vsel %vm417, %v2203, 4286644096
      %v2268 = vsel %vm417, %v2204, 4286644096
      %v2269 = vsel %vm417, %v2205, 4286644096
      %v2270 = vsel %vm417, %v2206, 4286644096
      %v2271 = vsel %vm417, %v2207, 4286644096
      %v2272 = vsel %vm417, %v2208, 4286644096
      %v2273 = vsel %vm417, %v2209, 4286644096
      %v2274 = vsel %vm417, %v2210, 4286644096
      %v2275 = vshrl.u32 %v2212, 16
      %v2277 = vshll.u32 %v2212, 16
      %v2279 = vrot.slane %v2277, 1
      %v2280 = vor.u32 %v2275, %v2279
      %v2281 = vshll.u32 %v2259, 16
      %v2283 = vrot.slane %v2281, 1
      %v2284 = vsel %vm483, %v2280, %v2283
      %v2285 = vshrl.u32 %v2215, 16
      %v2287 = vshll.u32 %v2215, 16
      %v2289 = vrot.slane %v2287, 1
      %v2290 = vor.u32 %v2285, %v2289
      %v2291 = vshll.u32 %v2260, 16
      %v2293 = vrot.slane %v2291, 1
      %v2294 = vsel %vm483, %v2290, %v2293
      %v2295 = vshrl.u32 %v2218, 16
      %v2297 = vshll.u32 %v2218, 16
      %v2299 = vrot.slane %v2297, 1
      %v2300 = vor.u32 %v2295, %v2299
      %v2301 = vshll.u32 %v2261, 16
      %v2303 = vrot.slane %v2301, 1
      %v2304 = vsel %vm483, %v2300, %v2303
      %v2305 = vshrl.u32 %v2221, 16
      %v2307 = vshll.u32 %v2221, 16
      %v2309 = vrot.slane %v2307, 1
      %v2310 = vor.u32 %v2305, %v2309
      %v2311 = vshll.u32 %v2262, 16
      %v2313 = vrot.slane %v2311, 1
      %v2314 = vsel %vm483, %v2310, %v2313
      %v2315 = vshrl.u32 %v2224, 16
      %v2317 = vshll.u32 %v2224, 16
      %v2319 = vrot.slane %v2317, 1
      %v2320 = vor.u32 %v2315, %v2319
      %v2321 = vshll.u32 %v2263, 16
      %v2323 = vrot.slane %v2321, 1
      %v2324 = vsel %vm483, %v2320, %v2323
      %v2325 = vshrl.u32 %v2227, 16
      %v2327 = vshll.u32 %v2227, 16
      %v2329 = vrot.slane %v2327, 1
      %v2330 = vor.u32 %v2325, %v2329
      %v2331 = vshll.u32 %v2264, 16
      %v2333 = vrot.slane %v2331, 1
      %v2334 = vsel %vm483, %v2330, %v2333
      %v2335 = vshrl.u32 %v2230, 16
      %v2337 = vshll.u32 %v2230, 16
      %v2339 = vrot.slane %v2337, 1
      %v2340 = vor.u32 %v2335, %v2339
      %v2341 = vshll.u32 %v2265, 16
      %v2343 = vrot.slane %v2341, 1
      %v2344 = vsel %vm483, %v2340, %v2343
      %v2345 = vshrl.u32 %v2233, 16
      %v2347 = vshll.u32 %v2233, 16
      %v2349 = vrot.slane %v2347, 1
      %v2350 = vor.u32 %v2345, %v2349
      %v2351 = vshll.u32 %v2266, 16
      %v2353 = vrot.slane %v2351, 1
      %v2354 = vsel %vm483, %v2350, %v2353
      %v2355 = vshrl.u32 %v2236, 16
      %v2357 = vshll.u32 %v2236, 16
      %v2359 = vrot.slane %v2357, 1
      %v2360 = vor.u32 %v2355, %v2359
      %v2361 = vshll.u32 %v2267, 16
      %v2363 = vrot.slane %v2361, 1
      %v2364 = vsel %vm483, %v2360, %v2363
      %v2365 = vshrl.u32 %v2239, 16
      %v2367 = vshll.u32 %v2239, 16
      %v2369 = vrot.slane %v2367, 1
      %v2370 = vor.u32 %v2365, %v2369
      %v2371 = vshll.u32 %v2268, 16
      %v2373 = vrot.slane %v2371, 1
      %v2374 = vsel %vm483, %v2370, %v2373
      %v2375 = vshrl.u32 %v2242, 16
      %v2377 = vshll.u32 %v2242, 16
      %v2379 = vrot.slane %v2377, 1
      %v2380 = vor.u32 %v2375, %v2379
      %v2381 = vshll.u32 %v2269, 16
      %v2383 = vrot.slane %v2381, 1
      %v2384 = vsel %vm483, %v2380, %v2383
      %v2385 = vshrl.u32 %v2245, 16
      %v2387 = vshll.u32 %v2245, 16
      %v2389 = vrot.slane %v2387, 1
      %v2390 = vor.u32 %v2385, %v2389
      %v2391 = vshll.u32 %v2270, 16
      %v2393 = vrot.slane %v2391, 1
      %v2394 = vsel %vm483, %v2390, %v2393
      %v2395 = vshrl.u32 %v2248, 16
      %v2397 = vshll.u32 %v2248, 16
      %v2399 = vrot.slane %v2397, 1
      %v2400 = vor.u32 %v2395, %v2399
      %v2401 = vshll.u32 %v2271, 16
      %v2403 = vrot.slane %v2401, 1
      %v2404 = vsel %vm483, %v2400, %v2403
      %v2405 = vshrl.u32 %v2251, 16
      %v2407 = vshll.u32 %v2251, 16
      %v2409 = vrot.slane %v2407, 1
      %v2410 = vor.u32 %v2405, %v2409
      %v2411 = vshll.u32 %v2272, 16
      %v2413 = vrot.slane %v2411, 1
      %v2414 = vsel %vm483, %v2410, %v2413
      %v2415 = vshrl.u32 %v2254, 16
      %v2417 = vshll.u32 %v2254, 16
      %v2419 = vrot.slane %v2417, 1
      %v2420 = vor.u32 %v2415, %v2419
      %v2421 = vshll.u32 %v2273, 16
      %v2423 = vrot.slane %v2421, 1
      %v2424 = vsel %vm483, %v2420, %v2423
      %v2425 = vshrl.u32 %v2257, 16
      %v2427 = vshll.u32 %v2257, 16
      %v2429 = vrot.slane %v2427, 1
      %v2430 = vor.u32 %v2425, %v2429
      %v2431 = vshll.u32 %v2274, 16
      %v2433 = vrot.slane %v2431, 1
      %v2434 = vsel %vm483, %v2430, %v2433
      %v2451 = vmax.bf16 %v2212, %v2284
      %v2452 = vmax.bf16 %v2215, %v2294
      %v2453 = vmax.bf16 %v2218, %v2304
      %v2454 = vmax.bf16 %v2221, %v2314
      %v2455 = vmax.bf16 %v2224, %v2324
      %v2456 = vmax.bf16 %v2227, %v2334
      %v2457 = vmax.bf16 %v2230, %v2344
      %v2458 = vmax.bf16 %v2233, %v2354
      %v2459 = vmax.bf16 %v2236, %v2364
      %v2460 = vmax.bf16 %v2239, %v2374
      %v2461 = vmax.bf16 %v2242, %v2384
      %v2462 = vmax.bf16 %v2245, %v2394
      %v2463 = vmax.bf16 %v2248, %v2404
      %v2464 = vmax.bf16 %v2251, %v2414
      %v2465 = vmax.bf16 %v2254, %v2424
      %v2466 = vmax.bf16 %v2257, %v2434
      %v2499 = vrot.slane %v2212, 1
      %v2500 = vrot.slane %v2259, 1
      %v2501 = vsel %vm708, %v2499, %v2500
      %v2502 = vrot.slane %v2215, 1
      %v2503 = vrot.slane %v2260, 1
      %v2504 = vsel %vm708, %v2502, %v2503
      %v2505 = vrot.slane %v2218, 1
      %v2506 = vrot.slane %v2261, 1
      %v2507 = vsel %vm708, %v2505, %v2506
      %v2508 = vrot.slane %v2221, 1
      %v2509 = vrot.slane %v2262, 1
      %v2510 = vsel %vm708, %v2508, %v2509
      %v2511 = vrot.slane %v2224, 1
      %v2512 = vrot.slane %v2263, 1
      %v2513 = vsel %vm708, %v2511, %v2512
      %v2514 = vrot.slane %v2227, 1
      %v2515 = vrot.slane %v2264, 1
      %v2516 = vsel %vm708, %v2514, %v2515
      %v2517 = vrot.slane %v2230, 1
      %v2518 = vrot.slane %v2265, 1
      %v2519 = vsel %vm708, %v2517, %v2518
      %v2520 = vrot.slane %v2233, 1
      %v2521 = vrot.slane %v2266, 1
      %v2522 = vsel %vm708, %v2520, %v2521
      %v2523 = vrot.slane %v2236, 1
      %v2524 = vrot.slane %v2267, 1
      %v2525 = vsel %vm708, %v2523, %v2524
      %v2526 = vrot.slane %v2239, 1
      %v2527 = vrot.slane %v2268, 1
      %v2528 = vsel %vm708, %v2526, %v2527
      %v2529 = vrot.slane %v2242, 1
      %v2530 = vrot.slane %v2269, 1
      %v2531 = vsel %vm708, %v2529, %v2530
      %v2532 = vrot.slane %v2245, 1
      %v2533 = vrot.slane %v2270, 1
      %v2534 = vsel %vm708, %v2532, %v2533
      %v2535 = vrot.slane %v2248, 1
      %v2536 = vrot.slane %v2271, 1
      %v2537 = vsel %vm708, %v2535, %v2536
      %v2538 = vrot.slane %v2251, 1
      %v2539 = vrot.slane %v2272, 1
      %v2540 = vsel %vm708, %v2538, %v2539
      %v2541 = vrot.slane %v2254, 1
      %v2542 = vrot.slane %v2273, 1
      %v2543 = vsel %vm708, %v2541, %v2542
      %v2544 = vrot.slane %v2257, 1
      %v2545 = vrot.slane %v2274, 1
      %v2546 = vsel %vm708, %v2544, %v2545
      %v2563 = vmax.bf16 %v2451, %v2501
      %v2564 = vmax.bf16 %v2452, %v2504
      %v2565 = vmax.bf16 %v2453, %v2507
      %v2566 = vmax.bf16 %v2454, %v2510
      %v2567 = vmax.bf16 %v2455, %v2513
      %v2568 = vmax.bf16 %v2456, %v2516
      %v2569 = vmax.bf16 %v2457, %v2519
      %v2570 = vmax.bf16 %v2458, %v2522
      %v2571 = vmax.bf16 %v2459, %v2525
      %v2572 = vmax.bf16 %v2460, %v2528
      %v2573 = vmax.bf16 %v2461, %v2531
      %v2574 = vmax.bf16 %v2462, %v2534
      %v2575 = vmax.bf16 %v2463, %v2537
      %v2576 = vmax.bf16 %v2464, %v2540
      %v2577 = vmax.bf16 %v2465, %v2543
      %v2578 = vmax.bf16 %v2466, %v2546
      %v2579 = vrot.slane %v2275, 1
      %v2580 = vrot.slane %v2277, 2
      %v2581 = vor.u32 %v2579, %v2580
      %v2582 = vshrl.u32 %v2259, 16
      %v2584 = vrot.slane %v2582, 1
      %v2585 = vrot.slane %v2281, 2
      %v2586 = vor.u32 %v2584, %v2585
      %v2587 = vsel %vm789, %v2581, %v2586
      %v2588 = vrot.slane %v2285, 1
      %v2589 = vrot.slane %v2287, 2
      %v2590 = vor.u32 %v2588, %v2589
      %v2591 = vshrl.u32 %v2260, 16
      %v2593 = vrot.slane %v2591, 1
      %v2594 = vrot.slane %v2291, 2
      %v2595 = vor.u32 %v2593, %v2594
      %v2596 = vsel %vm789, %v2590, %v2595
      %v2597 = vrot.slane %v2295, 1
      %v2598 = vrot.slane %v2297, 2
      %v2599 = vor.u32 %v2597, %v2598
      %v2600 = vshrl.u32 %v2261, 16
      %v2602 = vrot.slane %v2600, 1
      %v2603 = vrot.slane %v2301, 2
      %v2604 = vor.u32 %v2602, %v2603
      %v2605 = vsel %vm789, %v2599, %v2604
      %v2606 = vrot.slane %v2305, 1
      %v2607 = vrot.slane %v2307, 2
      %v2608 = vor.u32 %v2606, %v2607
      %v2609 = vshrl.u32 %v2262, 16
      %v2611 = vrot.slane %v2609, 1
      %v2612 = vrot.slane %v2311, 2
      %v2613 = vor.u32 %v2611, %v2612
      %v2614 = vsel %vm789, %v2608, %v2613
      %v2615 = vrot.slane %v2315, 1
      %v2616 = vrot.slane %v2317, 2
      %v2617 = vor.u32 %v2615, %v2616
      %v2618 = vshrl.u32 %v2263, 16
      %v2620 = vrot.slane %v2618, 1
      %v2621 = vrot.slane %v2321, 2
      %v2622 = vor.u32 %v2620, %v2621
      %v2623 = vsel %vm789, %v2617, %v2622
      %v2624 = vrot.slane %v2325, 1
      %v2625 = vrot.slane %v2327, 2
      %v2626 = vor.u32 %v2624, %v2625
      %v2627 = vshrl.u32 %v2264, 16
      %v2629 = vrot.slane %v2627, 1
      %v2630 = vrot.slane %v2331, 2
      %v2631 = vor.u32 %v2629, %v2630
      %v2632 = vsel %vm789, %v2626, %v2631
      %v2633 = vrot.slane %v2335, 1
      %v2634 = vrot.slane %v2337, 2
      %v2635 = vor.u32 %v2633, %v2634
      %v2636 = vshrl.u32 %v2265, 16
      %v2638 = vrot.slane %v2636, 1
      %v2639 = vrot.slane %v2341, 2
      %v2640 = vor.u32 %v2638, %v2639
      %v2641 = vsel %vm789, %v2635, %v2640
      %v2642 = vrot.slane %v2345, 1
      %v2643 = vrot.slane %v2347, 2
      %v2644 = vor.u32 %v2642, %v2643
      %v2645 = vshrl.u32 %v2266, 16
      %v2647 = vrot.slane %v2645, 1
      %v2648 = vrot.slane %v2351, 2
      %v2649 = vor.u32 %v2647, %v2648
      %v2650 = vsel %vm789, %v2644, %v2649
      %v2651 = vrot.slane %v2355, 1
      %v2652 = vrot.slane %v2357, 2
      %v2653 = vor.u32 %v2651, %v2652
      %v2654 = vshrl.u32 %v2267, 16
      %v2656 = vrot.slane %v2654, 1
      %v2657 = vrot.slane %v2361, 2
      %v2658 = vor.u32 %v2656, %v2657
      %v2659 = vsel %vm789, %v2653, %v2658
      %v2660 = vrot.slane %v2365, 1
      %v2661 = vrot.slane %v2367, 2
      %v2662 = vor.u32 %v2660, %v2661
      %v2663 = vshrl.u32 %v2268, 16
      %v2665 = vrot.slane %v2663, 1
      %v2666 = vrot.slane %v2371, 2
      %v2667 = vor.u32 %v2665, %v2666
      %v2668 = vsel %vm789, %v2662, %v2667
      %v2669 = vrot.slane %v2375, 1
      %v2670 = vrot.slane %v2377, 2
      %v2671 = vor.u32 %v2669, %v2670
      %v2672 = vshrl.u32 %v2269, 16
      %v2674 = vrot.slane %v2672, 1
      %v2675 = vrot.slane %v2381, 2
      %v2676 = vor.u32 %v2674, %v2675
      %v2677 = vsel %vm789, %v2671, %v2676
      %v2678 = vrot.slane %v2385, 1
      %v2679 = vrot.slane %v2387, 2
      %v2680 = vor.u32 %v2678, %v2679
      %v2681 = vshrl.u32 %v2270, 16
      %v2683 = vrot.slane %v2681, 1
      %v2684 = vrot.slane %v2391, 2
      %v2685 = vor.u32 %v2683, %v2684
      %v2686 = vsel %vm789, %v2680, %v2685
      %v2687 = vrot.slane %v2395, 1
      %v2688 = vrot.slane %v2397, 2
      %v2689 = vor.u32 %v2687, %v2688
      %v2690 = vshrl.u32 %v2271, 16
      %v2692 = vrot.slane %v2690, 1
      %v2693 = vrot.slane %v2401, 2
      %v2694 = vor.u32 %v2692, %v2693
      %v2695 = vsel %vm789, %v2689, %v2694
      %v2696 = vrot.slane %v2405, 1
      %v2697 = vrot.slane %v2407, 2
      %v2698 = vor.u32 %v2696, %v2697
      %v2699 = vshrl.u32 %v2272, 16
      %v2701 = vrot.slane %v2699, 1
      %v2702 = vrot.slane %v2411, 2
      %v2703 = vor.u32 %v2701, %v2702
      %v2704 = vsel %vm789, %v2698, %v2703
      %v2705 = vrot.slane %v2415, 1
      %v2706 = vrot.slane %v2417, 2
      %v2707 = vor.u32 %v2705, %v2706
      %v2708 = vshrl.u32 %v2273, 16
      %v2710 = vrot.slane %v2708, 1
      %v2711 = vrot.slane %v2421, 2
      %v2712 = vor.u32 %v2710, %v2711
      %v2713 = vsel %vm789, %v2707, %v2712
      %v2714 = vrot.slane %v2425, 1
      %v2715 = vrot.slane %v2427, 2
      %v2716 = vor.u32 %v2714, %v2715
      %v2717 = vshrl.u32 %v2274, 16
      %v2719 = vrot.slane %v2717, 1
      %v2720 = vrot.slane %v2431, 2
      %v2721 = vor.u32 %v2719, %v2720
      %v2722 = vsel %vm789, %v2716, %v2721
      %v2739 = vmax.bf16 %v2563, %v2587
      %v2740 = vmax.bf16 %v2564, %v2596
      %v2741 = vmax.bf16 %v2565, %v2605
      %v2742 = vmax.bf16 %v2566, %v2614
      %v2743 = vmax.bf16 %v2567, %v2623
      %v2744 = vmax.bf16 %v2568, %v2632
      %v2745 = vmax.bf16 %v2569, %v2641
      %v2746 = vmax.bf16 %v2570, %v2650
      %v2747 = vmax.bf16 %v2571, %v2659
      %v2748 = vmax.bf16 %v2572, %v2668
      %v2749 = vmax.bf16 %v2573, %v2677
      %v2750 = vmax.bf16 %v2574, %v2686
      %v2751 = vmax.bf16 %v2575, %v2695
      %v2752 = vmax.bf16 %v2576, %v2704
      %v2753 = vmax.bf16 %v2577, %v2713
      %v2754 = vmax.bf16 %v2578, %v2722
      %v2755 = vrot.slane %v2212, 2
      %v2756 = vrot.slane %v2259, 2
      %v2757 = vsel %vm966, %v2755, %v2756
      %v2758 = vrot.slane %v2215, 2
      %v2759 = vrot.slane %v2260, 2
      %v2760 = vsel %vm966, %v2758, %v2759
      %v2761 = vrot.slane %v2218, 2
      %v2762 = vrot.slane %v2261, 2
      %v2763 = vsel %vm966, %v2761, %v2762
      %v2764 = vrot.slane %v2221, 2
      %v2765 = vrot.slane %v2262, 2
      %v2766 = vsel %vm966, %v2764, %v2765
      %v2767 = vrot.slane %v2224, 2
      %v2768 = vrot.slane %v2263, 2
      %v2769 = vsel %vm966, %v2767, %v2768
      %v2770 = vrot.slane %v2227, 2
      %v2771 = vrot.slane %v2264, 2
      %v2772 = vsel %vm966, %v2770, %v2771
      %v2773 = vrot.slane %v2230, 2
      %v2774 = vrot.slane %v2265, 2
      %v2775 = vsel %vm966, %v2773, %v2774
      %v2776 = vrot.slane %v2233, 2
      %v2777 = vrot.slane %v2266, 2
      %v2778 = vsel %vm966, %v2776, %v2777
      %v2779 = vrot.slane %v2236, 2
      %v2780 = vrot.slane %v2267, 2
      %v2781 = vsel %vm966, %v2779, %v2780
      %v2782 = vrot.slane %v2239, 2
      %v2783 = vrot.slane %v2268, 2
      %v2784 = vsel %vm966, %v2782, %v2783
      %v2785 = vrot.slane %v2242, 2
      %v2786 = vrot.slane %v2269, 2
      %v2787 = vsel %vm966, %v2785, %v2786
      %v2788 = vrot.slane %v2245, 2
      %v2789 = vrot.slane %v2270, 2
      %v2790 = vsel %vm966, %v2788, %v2789
      %v2791 = vrot.slane %v2248, 2
      %v2792 = vrot.slane %v2271, 2
      %v2793 = vsel %vm966, %v2791, %v2792
      %v2794 = vrot.slane %v2251, 2
      %v2795 = vrot.slane %v2272, 2
      %v2796 = vsel %vm966, %v2794, %v2795
      %v2797 = vrot.slane %v2254, 2
      %v2798 = vrot.slane %v2273, 2
      %v2799 = vsel %vm966, %v2797, %v2798
      %v2800 = vrot.slane %v2257, 2
      %v2801 = vrot.slane %v2274, 2
      %v2802 = vsel %vm966, %v2800, %v2801
      %v2819 = vmax.bf16 %v2739, %v2757
      %v2820 = vmax.bf16 %v2740, %v2760
      %v2821 = vmax.bf16 %v2741, %v2763
      %v2822 = vmax.bf16 %v2742, %v2766
      %v2823 = vmax.bf16 %v2743, %v2769
      %v2824 = vmax.bf16 %v2744, %v2772
      %v2825 = vmax.bf16 %v2745, %v2775
      %v2826 = vmax.bf16 %v2746, %v2778
      %v2827 = vmax.bf16 %v2747, %v2781
      %v2828 = vmax.bf16 %v2748, %v2784
      %v2829 = vmax.bf16 %v2749, %v2787
      %v2830 = vmax.bf16 %v2750, %v2790
      %v2831 = vmax.bf16 %v2751, %v2793
      %v2832 = vmax.bf16 %v2752, %v2796
      %v2833 = vmax.bf16 %v2753, %v2799
      %v2834 = vmax.bf16 %v2754, %v2802
      %s2835 = scalar_lea.vmem %s1, 48
      %v2836 = vld [vmem:[%s2835] sm:$0xf]
      %v2837 = vld [vmem:[%s2835 + $0x4] sm:$0xf]
      %v2838 = vld [vmem:[%s2835 + $0x8] sm:$0xf]
      %v2839 = vld [vmem:[%s2835 + $0xc] sm:$0xf]
      %v2844 = vunpack.c.l.b16 %v2836
      %v2845 = vunpack.c.l.b16 %v2837
      %v2846 = vunpack.c.l.b16 %v2838
      %v2847 = vunpack.c.l.b16 %v2839
      %v2848 = vpack.c.b16 %v2845, %v2844
      %v2849 = vpack.c.b16 %v2847, %v2846
      %v2851 = vsel %vm1062, %v2848, 0
      %v2854 = vsel %vm1062, %v2849, 0
      %v2857 = vsel %vm1062, %v2819, 0
      %v2860 = vsel %vm1062, %v2820, 0
      %v2863 = vsel %vm1062, %v2821, 0
      %v2866 = vsel %vm1062, %v2822, 0
      %v2869 = vsel %vm1062, %v2823, 0
      %v2872 = vsel %vm1062, %v2824, 0
      %v2875 = vsel %vm1062, %v2825, 0
      %v2878 = vsel %vm1062, %v2826, 0
      %v2881 = vsel %vm1062, %v2827, 0
      %v2884 = vsel %vm1062, %v2828, 0
      %v2887 = vsel %vm1062, %v2829, 0
      %v2890 = vsel %vm1062, %v2830, 0
      %v2893 = vsel %vm1062, %v2831, 0
      %v2896 = vsel %vm1062, %v2832, 0
      %v2899 = vsel %vm1062, %v2833, 0
      %v2902 = vsel %vm1062, %v2834, 0
      %2904 = vmatprep.subr.bf16.mxu0 0
      %2905 = vmatpush1.bf16.xpose.msra.mxu0 %v2857
      %2906 = vmatprep.subr.bf16.mxu0 0
      %2907 = vmatpush1.bf16.xpose.msra.mxu0 %v2860
      %2908 = vmatprep.subr.bf16.mxu0 0
      %2909 = vmatpush1.bf16.xpose.msra.mxu0 %v2863
      %2910 = vmatprep.subr.bf16.mxu0 0
      %2911 = vmatpush1.bf16.xpose.msra.mxu0 %v2866
      %2912 = vmatprep.subr.bf16.mxu0 0
      %2913 = vmatpush1.bf16.xpose.msra.mxu0 %v2869
      %2914 = vmatprep.subr.bf16.mxu0 0
      %2915 = vmatpush1.bf16.xpose.msra.mxu0 %v2872
      %2916 = vmatprep.subr.bf16.mxu0 0
      %2917 = vmatpush1.bf16.xpose.msra.mxu0 %v2875
      %2918 = vmatprep.subr.bf16.mxu0 0
      %2919 = vmatpush1.bf16.xpose.msra.mxu0 %v2878
      %2920 = vmatprep.subr.bf16.mxu0 0
      %2921 = vmatpush1.bf16.xpose.msra.mxu0 %v2881
      %2922 = vmatprep.subr.bf16.mxu0 0
      %2923 = vmatpush1.bf16.xpose.msra.mxu0 %v2884
      %2924 = vmatprep.subr.bf16.mxu0 0
      %2925 = vmatpush1.bf16.xpose.msra.mxu0 %v2887
      %2926 = vmatprep.subr.bf16.mxu0 0
      %2927 = vmatpush1.bf16.xpose.msra.mxu0 %v2890
      %2928 = vmatprep.subr.bf16.mxu0 0
      %2929 = vmatpush1.bf16.xpose.msra.mxu0 %v2893
      %2930 = vmatprep.subr.bf16.mxu0 0
      %2931 = vmatpush1.bf16.xpose.msra.mxu0 %v2896
      %2932 = vmatprep.subr.bf16.mxu0 0
      %2933 = vmatpush1.bf16.xpose.msra.mxu0 %v2899
      %2934 = vmatprep.subr.bf16.mxu0 0
      %2935 = vmatpush1.bf16.xpose.msra.mxu0 %v2902
      %2936 = vmatprep.mubr.bf16.mxu0 0
      %2937 = vmatmul.mubr.bf16.gmra.mrb[0].mxu0 %v2851
      %v2938 = vpop.f32.mrb[0].mxu0
      %v2939 = vadd.f32 0.0, %v2938
      %v2940 = vpop.f32.mrb[0].mxu0
      %v2941 = vadd.f32 0.0, %v2940
      %v2942 = vpop.f32.mrb[0].mxu0
      %v2943 = vadd.f32 0.0, %v2942
      %v2944 = vpop.f32.mrb[0].mxu0
      %v2945 = vadd.f32 0.0, %v2944
      %2946 = vmatprep.mubr.bf16.mxu0 0
      %2947 = vmatmul.mubr.bf16.gmra.mrb[0].mxu0 %v2854
      %v2948 = vpop.f32.mrb[0].mxu0
      %v2949 = vadd.f32 0.0, %v2948
      %v2950 = vpop.f32.mrb[0].mxu0
      %v2951 = vadd.f32 0.0, %v2950
      %v2952 = vpop.f32.mrb[0].mxu0
      %v2953 = vadd.f32 0.0, %v2952
      %v2954 = vpop.f32.mrb[0].mxu0
      %v2955 = vadd.f32 0.0, %v2954
      %2956 = vdwg.mxu0
      %v2957 = vadd.f32 %v2118, %v2939
      %v2958 = vadd.f32 %v2119, %v2941
      %v2959 = vadd.f32 %v2120, %v2943
      %v2960 = vadd.f32 %v2121, %v2945
      %v2961 = vadd.f32 %v2122, %v2949
      %v2962 = vadd.f32 %v2123, %v2951
      %v2963 = vadd.f32 %v2124, %v2953
      %v2964 = vadd.f32 %v2125, %v2955
      %v2965 = vld [vmem:[%s2] sm:$0xff]
      %v2966 = vld [vmem:[%s2 + $0x8] sm:$0xff]
      %v2967 = vld [vmem:[%s2 + $0x10] sm:$0xff]
      %v2968 = vld [vmem:[%s2 + $0x18] sm:$0xff]
      %2970 = vset.pattern.permute.xlu0 0
      %2971 = vperm.xlu0 %2970, %v2965
      %v2972 = vpop.permute.xlu0 %2971
      %2975 = vset.pattern.permute.xlu0 0
      %2976 = vperm.xlu0 %2975, %v2966
      %v2977 = vpop.permute.xlu0 %2976
      %2980 = vset.pattern.permute.xlu0 0
      %2981 = vperm.xlu0 %2980, %v2967
      %v2982 = vpop.permute.xlu0 %2981
      %2985 = vset.pattern.permute.xlu0 0
      %2986 = vperm.xlu0 %2985, %v2968
      %v2987 = vpop.permute.xlu0 %2986
      %v2989 = vmul.f32 %v2957, %v2972
      %v2990 = vmul.f32 %v2958, %v2972
      %v2991 = vmul.f32 %v2959, %v2977
      %v2992 = vmul.f32 %v2960, %v2977
      %v2993 = vmul.f32 %v2961, %v2982
      %v2994 = vmul.f32 %v2962, %v2982
      %v2995 = vmul.f32 %v2963, %v2987
      %v2996 = vmul.f32 %v2964, %v2987
      %v2997 = vld [vmem:[%s3] sm:$0xff]
      %v2998 = vld [vmem:[%s3 + $0x8] sm:$0xff]
      %v2999 = vld [vmem:[%s3 + $0x10] sm:$0xff]
      %v3000 = vld [vmem:[%s3 + $0x18] sm:$0xff]
      %3002 = vset.pattern.permute.xlu0 0
      %3003 = vperm.xlu0 %3002, %v2997
      %v3004 = vpop.permute.xlu0 %3003
      %3007 = vset.pattern.permute.xlu0 0
      %3008 = vperm.xlu0 %3007, %v2998
      %v3009 = vpop.permute.xlu0 %3008
      %3012 = vset.pattern.permute.xlu0 0
      %3013 = vperm.xlu0 %3012, %v2999
      %v3014 = vpop.permute.xlu0 %3013
      %3017 = vset.pattern.permute.xlu0 0
      %3018 = vperm.xlu0 %3017, %v3000
      %v3019 = vpop.permute.xlu0 %3018
      %v3021 = vadd.f32 %v2989, %v3004
      %v3022 = vadd.f32 %v2990, %v3004
      %v3023 = vadd.f32 %v2991, %v3009
      %v3024 = vadd.f32 %v2992, %v3009
      %v3025 = vadd.f32 %v2993, %v3014
      %v3026 = vadd.f32 %v2994, %v3014
      %v3027 = vadd.f32 %v2995, %v3019
      %v3028 = vadd.f32 %v2996, %v3019
      %v3029 = vxor.u32 %v3021, 2147483648
      %v3030 = vxor.u32 %v3022, 2147483648
      %v3031 = vxor.u32 %v3023, 2147483648
      %v3032 = vxor.u32 %v3024, 2147483648
      %v3033 = vxor.u32 %v3025, 2147483648
      %v3034 = vxor.u32 %v3026, 2147483648
      %v3035 = vxor.u32 %v3027, 2147483648
      %v3036 = vxor.u32 %v3028, 2147483648
      %v3037 = vmul.f32 %v3029, 1.442695
      %v3038 = vpow.pop %v3037
      %v3039 = vmul.f32 %v3030, 1.442695
      %v3040 = vpow.pop %v3039
      %v3041 = vmul.f32 %v3031, 1.442695
      %v3042 = vpow.pop %v3041
      %v3043 = vmul.f32 %v3032, 1.442695
      %v3044 = vpow.pop %v3043
      %v3045 = vmul.f32 %v3033, 1.442695
      %v3046 = vpow.pop %v3045
      %v3047 = vmul.f32 %v3034, 1.442695
      %v3048 = vpow.pop %v3047
      %v3049 = vmul.f32 %v3035, 1.442695
      %v3050 = vpow.pop %v3049
      %v3051 = vmul.f32 %v3036, 1.442695
      %v3052 = vpow.pop %v3051
      %v3053 = vadd.f32 %v3038, 1.0
      %v3054 = vadd.f32 %v3040, 1.0
      %v3055 = vadd.f32 %v3042, 1.0
      %v3056 = vadd.f32 %v3044, 1.0
      %v3057 = vadd.f32 %v3046, 1.0
      %v3058 = vadd.f32 %v3048, 1.0
      %v3059 = vadd.f32 %v3050, 1.0
      %v3060 = vadd.f32 %v3052, 1.0
      %v3061 = vrcp.pop %v3053
      %v3062 = vmul.f32 1.0, %v3061
      %v3063 = vrcp.pop %v3054
      %v3064 = vmul.f32 1.0, %v3063
      %v3065 = vrcp.pop %v3055
      %v3066 = vmul.f32 1.0, %v3065
      %v3067 = vrcp.pop %v3056
      %v3068 = vmul.f32 1.0, %v3067
      %v3069 = vrcp.pop %v3057
      %v3070 = vmul.f32 1.0, %v3069
      %v3071 = vrcp.pop %v3058
      %v3072 = vmul.f32 1.0, %v3071
      %v3073 = vrcp.pop %v3059
      %v3074 = vmul.f32 1.0, %v3073
      %v3075 = vrcp.pop %v3060
      %v3076 = vmul.f32 1.0, %v3075
      %v3077 = vmul.f32 %v3021, %v3062
      %v3078 = vmul.f32 %v3022, %v3064
      %v3079 = vmul.f32 %v3023, %v3066
      %v3080 = vmul.f32 %v3024, %v3068
      %v3081 = vmul.f32 %v3025, %v3070
      %v3082 = vmul.f32 %v3026, %v3072
      %v3083 = vmul.f32 %v3027, %v3074
      %v3084 = vmul.f32 %v3028, %v3076
      %3085 = vst [vmem:[%s197] sm:$0xff] %v3077
      %3086 = vst [vmem:[%s197 + $0x8] sm:$0xff] %v3078
      %3087 = vst [vmem:[%s197 + $0x10] sm:$0xff] %v3079
      %3088 = vst [vmem:[%s197 + $0x18] sm:$0xff] %v3080
      %3089 = vst [vmem:[%s197 + $0x20] sm:$0xff] %v3081
      %3090 = vst [vmem:[%s197 + $0x28] sm:$0xff] %v3082
      %3091 = vst [vmem:[%s197 + $0x30] sm:$0xff] %v3083
      %3092 = vst [vmem:[%s197 + $0x38] sm:$0xff] %v3084
      %p3093 = scmp.lt.s32.totalorder %s15, 1
      %s3094 = scalar_select %p3093, %s15, 1
      %s3095 = smul.addr %s3094, 8
      %s3096 = smul.addr %s3095, 8
      %s3097 = scalar_lea.vmem %s4, %s3096
      // Predicated region
      $region37: #{spp_forward.1} parent=35 // pred_check
        %p3098 = pneg %p122
      $region38: #{spp_forward.1} parent=35 // pred_check_branch
        %3100 = sbr.rel (%p3098) target = $region40
      $region39: #{spp_forward.1} parent=35 // pred_region
        _
      $region40: #{spp_forward.1} parent=35 // pred_fallthru
        _
    $region36: #{spp_forward.1} parent=5 // pred_fallthru
      _
    %p3101 = scmp.le.s32.totalorder 2, %s10
    // Predicated region
    $region41: #{spp_forward.1} parent=5 // pred_check
      %p3102 = pneg %p3101
    $region42: #{spp_forward.1} parent=5 // pred_check_branch
      %3104 = sbr.rel (%p3102) target = $region44
    $region43: #{spp_forward.1} parent=5 // pred_region
      %s3105 = ssub.s32 %s10, 2
      // Predicated region
      $region45: #{spp_forward.1} parent=43 // pred_check
        %p3106 = pneg %p128
      $region46: #{spp_forward.1} parent=43 // pred_check_branch
        %3108 = sbr.rel (%p3106) target = $region48
      $region47: #{spp_forward.1} parent=43 // pred_region
        %p3109 = scmp.lt.s32.totalorder %s16, 1
        %s3110 = scalar_select %p3109, %s16, 1
        %s3111 = smul.addr %s3110, 8
        %s3112 = smul.addr %s3111, 8
        %s3113 = scalar_lea.vmem %s4, %s3112
      $region48: #{spp_forward.1} parent=43 // pred_fallthru
        _
    $region44: #{spp_forward.1} parent=5 // pred_fallthru
      _
  $region6: #{spp_forward.1} parent=0 // loop_footer
    %s14 = sadd.s32 1, %s10
  $region7: #{spp_forward.1} parent=0 // loop_footer_branch
    %9 = sbr.rel target = $region3
  $region8: #{spp_forward.1} parent=0 // loop_exit
    _

</llo_original>
